<compile_context>
chip_gen: v5e
topology: v5e:2x2
jax: 0.10.0
libtpu: 0.0.40
codegen_flags: <defaults>
</compile_context>

<pallas_src>
import functools

import jax
import jax.numpy as jnp
from jax import lax
from jax.experimental import pallas as pl
from jax.experimental.pallas import tpu as pltpu


def _pick_row_tile(h_out: int, wp: int, max_lanes: int = 2048) -> int:
    """Largest row tile th that divides h_out, keeps the output BlockSpec legal
    (th % 8 == 0 or th == h_out), and keeps the wide strip <= max_lanes lanes."""
    divisors = [d for d in range(1, h_out + 1) if h_out % d == 0]
    legal = [d for d in divisors if d == h_out or d % 8 == 0]
    fitting = [d for d in legal if d * wp <= max_lanes]
    if fitting:
        return max(fitting)
    return min(legal)


def _conv_kernel(x_ref, w_ref, b_ref, o_ref, *, K, stride, Wp, W_out, th):
    # x_ref : (1, 1, C_in, rows*Wp)  bf16  row-slab, row-major flattened per channel
    # w_ref : (K*K, C_out, C_in)     bf16  w_ref[kh*K + kw] == weight[:, :, kh, kw]
    # b_ref : (C_out, 1)             f32
    # o_ref : (1, C_out, th, W_out)  f32
    c_out = o_ref.shape[1]
    Lw = (th - 1) * Wp + W_out              # wide output strip length (lane axis)

    acc = jnp.zeros((c_out, Lw), jnp.float32)
    for kh in range(K):
        for kw in range(K):
            off = kh * Wp + kw              # static lane offset into the flat slab
            if stride == 1:
                xs = x_ref[0, 0, :, pl.ds(off, Lw)]            # (C_in, Lw)
            else:
                # TODO(synk): strided-lane path is implemented but not exercised
                # by the stride=1 test below.
                xs = x_ref[0, 0, :, pl.ds(off, Lw, stride)]    # (C_in, Lw)
            acc = acc + jnp.dot(w_ref[kh * K + kw], xs,
                                preferred_element_type=jnp.float32)
    acc = acc + b_ref[...]                  # (C_out, 1) broadcasts over lanes

    # Lane positions [i*Wp, i*Wp + W_out) of the wide strip hold output row i;
    # the extra (Wp - W_out) "wrap" lanes per row are simply never stored.
    for i in range(th):
        o_ref[0, :, i, :] = acc[:, i * Wp:i * Wp + W_out]


def conv_layer_forward(x, weight, bias, stride=1):
    """ReflectionPad2d(K//2) followed by Conv2d(stride) — PyTorch ConvLayer."""
    N, C_in, H, W = x.shape
    C_out, C_in_w, K, K2 = weight.shape
    assert C_in_w == C_in and K == K2
    pad = K // 2
    assert pad < H and pad < W, "ReflectionPad2d requires pad < H and pad < W"

    # Reflection padding (cheap layout glue; matches torch semantics exactly).
    xp = jnp.pad(x, ((0, 0), (0, 0), (pad, pad), (pad, pad)), mode="reflect")
    Hp, Wp = H + 2 * pad, W + 2 * pad
    H_out = (Hp - K) // stride + 1
    W_out = (Wp - K) // stride + 1

    th = _pick_row_tile(H_out, Wp)          # output rows per grid step
    n_hb = H_out // th
    rows = (th - 1) * stride + K            # padded-input rows needed per block

    # Overlapping row slabs (halo of K - stride rows), flattened per channel so
    # the kernel can take contiguous "wide" lane slices.  This (plus the pad)
    # is the only wrapper-side copy — there is no K*K im2col expansion.
    xp_bf = xp.astype(jnp.bfloat16)
    slabs = jnp.stack(
        [xp_bf[:, :, hb * th * stride: hb * th * stride + rows, :]
         for hb in range(n_hb)],
        axis=1)                                              # (N, n_hb, C_in, rows, Wp)
    slabs = slabs.reshape(N, n_hb, C_in, rows * Wp)

    # Weights regrouped so the kernel can grab W[:, :, kh, kw] with one index.
    w2 = jnp.transpose(weight, (2, 3, 0, 1)).reshape(K * K, C_out, C_in)
    w2 = w2.astype(jnp.bfloat16)
    b2 = bias.astype(jnp.float32).reshape(C_out, 1)

    kernel = functools.partial(_conv_kernel, K=K, stride=stride, Wp=Wp,
                               W_out=W_out, th=th)

    flops = 2 * N * H_out * W_out * C_out * C_in * K * K
    bytes_accessed = (slabs.size * 2 + w2.size * 2 + b2.size * 4
                      + N * C_out * H_out * W_out * 4)

    out = pl.pallas_call(
        kernel,
        out_shape=jax.ShapeDtypeStruct((N, C_out, H_out, W_out), jnp.float32),
        grid_spec=pltpu.PrefetchScalarGridSpec(
            num_scalar_prefetch=0,
            grid=(N, n_hb),
            in_specs=[
                pl.BlockSpec((1, 1, C_in, rows * Wp), lambda n, hb: (n, hb, 0, 0)),
                pl.BlockSpec((K * K, C_out, C_in), lambda n, hb: (0, 0, 0)),
                pl.BlockSpec((C_out, 1), lambda n, hb: (0, 0)),
            ],
            out_specs=pl.BlockSpec((1, C_out, th, W_out),
                                   lambda n, hb: (n, 0, hb, 0)),
        ),
        compiler_params=pltpu.CompilerParams(
            dimension_semantics=("parallel", "parallel")),
        cost_estimate=pl.CostEstimate(flops=flops, transcendentals=0,
                                      bytes_accessed=int(bytes_accessed)),
    )(slabs, w2, b2)
    return out


def _reference(x, weight, bias, stride):
    pad = weight.shape[-1] // 2
    xp = jnp.pad(x, ((0, 0), (0, 0), (pad, pad), (pad, pad)), mode="reflect")
    y = lax.conv_general_dilated(
        xp, weight, window_strides=(stride, stride), padding="VALID",
        dimension_numbers=("NCHW", "OIHW", "NCHW"),
        preferred_element_type=jnp.float32)
    return y + bias[None, :, None, None]


if __name__ == "__main__":
    def run_case(N, C_in, C_out, H, W, K, stride, key):
        kx, kw, kb = jax.random.split(key, 3)
        x = jax.random.normal(kx, (N, C_in, H, W), dtype=jnp.float32)
        fan_in = C_in * K * K
        bound = 1.0 / (fan_in ** 0.5)
        weight = jax.random.uniform(kw, (C_out, C_in, K, K), jnp.float32,
                                    -bound, bound)
        bias = jax.random.uniform(kb, (C_out,), jnp.float32, -bound, bound)

        fwd = jax.jit(conv_layer_forward, static_argnames="stride")
        out = jax.block_until_ready(fwd(x, weight, bias, stride=stride))

        # Compare against a reference computed on the same bf16-rounded
        # operands the kernel feeds the MXU (f32 accumulation on both sides),
        # so the comparison is tight.
        x_r = x.astype(jnp.bfloat16).astype(jnp.float32)
        w_r = weight.astype(jnp.bfloat16).astype(jnp.float32)
        ref = jax.block_until_ready(_reference(x_r, w_r, bias, stride))

        H_out = (H + 2 * (K // 2) - K) // stride + 1
        W_out = (W + 2 * (K // 2) - K) // stride + 1
        assert out.shape == (N, C_out, H_out, W_out), out.shape
        max_err = float(jnp.max(jnp.abs(out - ref)))
        assert jnp.allclose(out, ref, atol=1e-3, rtol=1e-3), max_err

    # ConvLayer(in_channels=4, out_channels=8, kernel_size=3, stride=1)
    run_case(2, 4, 8, 16, 16, 3, 1, jax.random.PRNGKey(0))
    # Taller map: exercises the multi-row-block tiled path (th=16, 4 blocks).
    run_case(1, 4, 8, 64, 64, 3, 1, jax.random.PRNGKey(1))

    print("KERNEL_OK")
</pallas_src>

<mosaic_0001>
module attributes {stable_mosaic.version = 11 : i64} {
  func.func @_conv_kernel(%arg0: i32, %arg1: i32, %arg2: memref<1x1x4x324xbf16, #tpu.memory_space<vmem>>, %arg3: memref<9x8x4xbf16, #tpu.memory_space<vmem>>, %arg4: memref<8x1xf32, #tpu.memory_space<vmem>>, %arg5: memref<1x8x16x16xf32, #tpu.memory_space<vmem>>) attributes {dimension_semantics = [#tpu.dimension_semantics<parallel>, #tpu.dimension_semantics<parallel>], iteration_bounds = array<i64: 2, 1>, scalar_prefetch = 0 : i64, scratch_operands = 0 : i64, tpu.core_type = #tpu.core_type<tc>, window_params = [{transform_indices = @transform_0, window_bounds = array<i64: 1, 1, 4, 324>}, {pipeline_mode = #tpu.pipeline_mode<synchronous>, transform_indices = @transform_1, window_bounds = array<i64: 9, 8, 4>}, {pipeline_mode = #tpu.pipeline_mode<synchronous>, transform_indices = @transform_2, window_bounds = array<i64: 8, 1>}, {transform_indices = @transform_3, window_bounds = array<i64: 1, 8, 16, 16>}]} {
    %cst = arith.constant 0.000000e+00 : f32
    %0 = vector.broadcast %cst : f32 to vector<8x286xf32>
    %c0 = arith.constant 0 : index
    %c0_0 = arith.constant 0 : index
    %c0_1 = arith.constant 0 : index
    %c0_2 = arith.constant 0 : index
    %1 = vector.load %arg2[%c0, %c0_0, %c0_1, %c0_2] : memref<1x1x4x324xbf16, #tpu.memory_space<vmem>>, vector<1x1x4x286xbf16>
    %2 = vector.shape_cast %1 : vector<1x1x4x286xbf16> to vector<4x286xbf16>
    %c0_3 = arith.constant 0 : index
    %c0_4 = arith.constant 0 : index
    %c0_5 = arith.constant 0 : index
    %3 = vector.load %arg3[%c0_3, %c0_4, %c0_5] : memref<9x8x4xbf16, #tpu.memory_space<vmem>>, vector<1x8x4xbf16>
    %4 = vector.shape_cast %3 : vector<1x8x4xbf16> to vector<8x4xbf16>
    %cst_6 = arith.constant dense<0.000000e+00> : vector<8x286xf32>
    %5 = tpu.matmul %4, %2, %cst_6 {dimension_numbers = #tpu.dot_dimension_numbers<[1], [0], [0], [1], [0, 0, 1, 1], [], []>} : vector<8x4xbf16>, vector<4x286xbf16>, vector<8x286xf32> -> vector<8x286xf32>
    %6 = arith.addf %0, %5 : vector<8x286xf32>
    %c0_7 = arith.constant 0 : index
    %c0_8 = arith.constant 0 : index
    %c0_9 = arith.constant 0 : index
    %c1 = arith.constant 1 : index
    %7 = vector.load %arg2[%c0_7, %c0_8, %c0_9, %c1] : memref<1x1x4x324xbf16, #tpu.memory_space<vmem>>, vector<1x1x4x286xbf16>
    %8 = vector.shape_cast %7 : vector<1x1x4x286xbf16> to vector<4x286xbf16>
    %c1_10 = arith.constant 1 : index
    %c0_11 = arith.constant 0 : index
    %c0_12 = arith.constant 0 : index
    %9 = vector.load %arg3[%c1_10, %c0_11, %c0_12] : memref<9x8x4xbf16, #tpu.memory_space<vmem>>, vector<1x8x4xbf16>
    %10 = vector.shape_cast %9 : vector<1x8x4xbf16> to vector<8x4xbf16>
    %cst_13 = arith.constant dense<0.000000e+00> : vector<8x286xf32>
    %11 = tpu.matmul %10, %8, %cst_13 {dimension_numbers = #tpu.dot_dimension_numbers<[1], [0], [0], [1], [0, 0, 1, 1], [], []>} : vector<8x4xbf16>, vector<4x286xbf16>, vector<8x286xf32> -> vector<8x286xf32>
    %12 = arith.addf %6, %11 : vector<8x286xf32>
    %c0_14 = arith.constant 0 : index
    %c0_15 = arith.constant 0 : index
    %c0_16 = arith.constant 0 : index
    %c2 = arith.constant 2 : index
    %13 = vector.load %arg2[%c0_14, %c0_15, %c0_16, %c2] : memref<1x1x4x324xbf16, #tpu.memory_space<vmem>>, vector<1x1x4x286xbf16>
    %14 = vector.shape_cast %13 : vector<1x1x4x286xbf16> to vector<4x286xbf16>
    %c2_17 = arith.constant 2 : index
    %c0_18 = arith.constant 0 : index
    %c0_19 = arith.constant 0 : index
    %15 = vector.load %arg3[%c2_17, %c0_18, %c0_19] : memref<9x8x4xbf16, #tpu.memory_space<vmem>>, vector<1x8x4xbf16>
    %16 = vector.shape_cast %15 : vector<1x8x4xbf16> to vector<8x4xbf16>
    %cst_20 = arith.constant dense<0.000000e+00> : vector<8x286xf32>
    %17 = tpu.matmul %16, %14, %cst_20 {dimension_numbers = #tpu.dot_dimension_numbers<[1], [0], [0], [1], [0, 0, 1, 1], [], []>} : vector<8x4xbf16>, vector<4x286xbf16>, vector<8x286xf32> -> vector<8x286xf32>
    %18 = arith.addf %12, %17 : vector<8x286xf32>
    %c0_21 = arith.constant 0 : index
    %c0_22 = arith.constant 0 : index
    %c0_23 = arith.constant 0 : index
    %c18 = arith.constant 18 : index
    %19 = vector.load %arg2[%c0_21, %c0_22, %c0_23, %c18] : memref<1x1x4x324xbf16, #tpu.memory_space<vmem>>, vector<1x1x4x286xbf16>
    %20 = vector.shape_cast %19 : vector<1x1x4x286xbf16> to vector<4x286xbf16>
    %c3 = arith.constant 3 : index
    %c0_24 = arith.constant 0 : index
    %c0_25 = arith.constant 0 : index
    %21 = vector.load %arg3[%c3, %c0_24, %c0_25] : memref<9x8x4xbf16, #tpu.memory_space<vmem>>, vector<1x8x4xbf16>
    %22 = vector.shape_cast %21 : vector<1x8x4xbf16> to vector<8x4xbf16>
    %cst_26 = arith.constant dense<0.000000e+00> : vector<8x286xf32>
    %23 = tpu.matmul %22, %20, %cst_26 {dimension_numbers = #tpu.dot_dimension_numbers<[1], [0], [0], [1], [0, 0, 1, 1], [], []>} : vector<8x4xbf16>, vector<4x286xbf16>, vector<8x286xf32> -> vector<8x286xf32>
    %24 = arith.addf %18, %23 : vector<8x286xf32>
    %c0_27 = arith.constant 0 : index
    %c0_28 = arith.constant 0 : index
    %c0_29 = arith.constant 0 : index
    %c19 = arith.constant 19 : index
    %25 = vector.load %arg2[%c0_27, %c0_28, %c0_29, %c19] : memref<1x1x4x324xbf16, #tpu.memory_space<vmem>>, vector<1x1x4x286xbf16>
    %26 = vector.shape_cast %25 : vector<1x1x4x286xbf16> to vector<4x286xbf16>
    %c4 = arith.constant 4 : index
    %c0_30 = arith.constant 0 : index
    %c0_31 = arith.constant 0 : index
    %27 = vector.load %arg3[%c4, %c0_30, %c0_31] : memref<9x8x4xbf16, #tpu.memory_space<vmem>>, vector<1x8x4xbf16>
    %28 = vector.shape_cast %27 : vector<1x8x4xbf16> to vector<8x4xbf16>
    %cst_32 = arith.constant dense<0.000000e+00> : vector<8x286xf32>
    %29 = tpu.matmul %28, %26, %cst_32 {dimension_numbers = #tpu.dot_dimension_numbers<[1], [0], [0], [1], [0, 0, 1, 1], [], []>} : vector<8x4xbf16>, vector<4x286xbf16>, vector<8x286xf32> -> vector<8x286xf32>
    %30 = arith.addf %24, %29 : vector<8x286xf32>
    %c0_33 = arith.constant 0 : index
    %c0_34 = arith.constant 0 : index
    %c0_35 = arith.constant 0 : index
    %c20 = arith.constant 20 : index
    %31 = vector.load %arg2[%c0_33, %c0_34, %c0_35, %c20] : memref<1x1x4x324xbf16, #tpu.memory_space<vmem>>, vector<1x1x4x286xbf16>
    %32 = vector.shape_cast %31 : vector<1x1x4x286xbf16> to vector<4x286xbf16>
    %c5 = arith.constant 5 : index
    %c0_36 = arith.constant 0 : index
    %c0_37 = arith.constant 0 : index
    %33 = vector.load %arg3[%c5, %c0_36, %c0_37] : memref<9x8x4xbf16, #tpu.memory_space<vmem>>, vector<1x8x4xbf16>
    %34 = vector.shape_cast %33 : vector<1x8x4xbf16> to vector<8x4xbf16>
    %cst_38 = arith.constant dense<0.000000e+00> : vector<8x286xf32>
    %35 = tpu.matmul %34, %32, %cst_38 {dimension_numbers = #tpu.dot_dimension_numbers<[1], [0], [0], [1], [0, 0, 1, 1], [], []>} : vector<8x4xbf16>, vector<4x286xbf16>, vector<8x286xf32> -> vector<8x286xf32>
    %36 = arith.addf %30, %35 : vector<8x286xf32>
    %c0_39 = arith.constant 0 : index
    %c0_40 = arith.constant 0 : index
    %c0_41 = arith.constant 0 : index
    %c36 = arith.constant 36 : index
    %37 = vector.load %arg2[%c0_39, %c0_40, %c0_41, %c36] : memref<1x1x4x324xbf16, #tpu.memory_space<vmem>>, vector<1x1x4x286xbf16>
    %38 = vector.shape_cast %37 : vector<1x1x4x286xbf16> to vector<4x286xbf16>
    %c6 = arith.constant 6 : index
    %c0_42 = arith.constant 0 : index
    %c0_43 = arith.constant 0 : index
    %39 = vector.load %arg3[%c6, %c0_42, %c0_43] : memref<9x8x4xbf16, #tpu.memory_space<vmem>>, vector<1x8x4xbf16>
    %40 = vector.shape_cast %39 : vector<1x8x4xbf16> to vector<8x4xbf16>
    %cst_44 = arith.constant dense<0.000000e+00> : vector<8x286xf32>
    %41 = tpu.matmul %40, %38, %cst_44 {dimension_numbers = #tpu.dot_dimension_numbers<[1], [0], [0], [1], [0, 0, 1, 1], [], []>} : vector<8x4xbf16>, vector<4x286xbf16>, vector<8x286xf32> -> vector<8x286xf32>
    %42 = arith.addf %36, %41 : vector<8x286xf32>
    %c0_45 = arith.constant 0 : index
    %c0_46 = arith.constant 0 : index
    %c0_47 = arith.constant 0 : index
    %c37 = arith.constant 37 : index
    %43 = vector.load %arg2[%c0_45, %c0_46, %c0_47, %c37] : memref<1x1x4x324xbf16, #tpu.memory_space<vmem>>, vector<1x1x4x286xbf16>
    %44 = vector.shape_cast %43 : vector<1x1x4x286xbf16> to vector<4x286xbf16>
    %c7 = arith.constant 7 : index
    %c0_48 = arith.constant 0 : index
    %c0_49 = arith.constant 0 : index
    %45 = vector.load %arg3[%c7, %c0_48, %c0_49] : memref<9x8x4xbf16, #tpu.memory_space<vmem>>, vector<1x8x4xbf16>
    %46 = vector.shape_cast %45 : vector<1x8x4xbf16> to vector<8x4xbf16>
    %cst_50 = arith.constant dense<0.000000e+00> : vector<8x286xf32>
    %47 = tpu.matmul %46, %44, %cst_50 {dimension_numbers = #tpu.dot_dimension_numbers<[1], [0], [0], [1], [0, 0, 1, 1], [], []>} : vector<8x4xbf16>, vector<4x286xbf16>, vector<8x286xf32> -> vector<8x286xf32>
    %48 = arith.addf %42, %47 : vector<8x286xf32>
    %c0_51 = arith.constant 0 : index
    %c0_52 = arith.constant 0 : index
    %c0_53 = arith.constant 0 : index
    %c38 = arith.constant 38 : index
    %49 = vector.load %arg2[%c0_51, %c0_52, %c0_53, %c38] : memref<1x1x4x324xbf16, #tpu.memory_space<vmem>>, vector<1x1x4x286xbf16>
    %50 = vector.shape_cast %49 : vector<1x1x4x286xbf16> to vector<4x286xbf16>
    %c8 = arith.constant 8 : index
    %c0_54 = arith.constant 0 : index
    %c0_55 = arith.constant 0 : index
    %51 = vector.load %arg3[%c8, %c0_54, %c0_55] : memref<9x8x4xbf16, #tpu.memory_space<vmem>>, vector<1x8x4xbf16>
    %52 = vector.shape_cast %51 : vector<1x8x4xbf16> to vector<8x4xbf16>
    %cst_56 = arith.constant dense<0.000000e+00> : vector<8x286xf32>
    %53 = tpu.matmul %52, %50, %cst_56 {dimension_numbers = #tpu.dot_dimension_numbers<[1], [0], [0], [1], [0, 0, 1, 1], [], []>} : vector<8x4xbf16>, vector<4x286xbf16>, vector<8x286xf32> -> vector<8x286xf32>
    %54 = arith.addf %48, %53 : vector<8x286xf32>
    %c0_57 = arith.constant 0 : index
    %c0_58 = arith.constant 0 : index
    %55 = vector.load %arg4[%c0_57, %c0_58] : memref<8x1xf32, #tpu.memory_space<vmem>>, vector<8x1xf32>
    %56 = vector.broadcast %55 : vector<8x1xf32> to vector<8x286xf32>
    %57 = arith.addf %54, %56 : vector<8x286xf32>
    %58 = vector.extract_strided_slice %57 {offsets = [0, 0], sizes = [8, 16], strides = [1, 1]} : vector<8x286xf32> to vector<8x16xf32>
    %c0_59 = arith.constant 0 : index
    %c0_60 = arith.constant 0 : index
    %c0_61 = arith.constant 0 : index
    %c0_62 = arith.constant 0 : index
    %59 = vector.load %arg5[%c0_59, %c0_60, %c0_61, %c0_62] : memref<1x8x16x16xf32, #tpu.memory_space<vmem>>, vector<1x8x1x16xf32>
    %60 = vector.shape_cast %59 : vector<1x8x1x16xf32> to vector<8x16xf32>
    %61 = vector.shape_cast %58 : vector<8x16xf32> to vector<1x8x1x16xf32>
    tpu.vector_store %arg5[%c0_59, %c0_60, %c0_61, %c0_62], %61 {strides = array<i32>} : memref<1x8x16x16xf32, #tpu.memory_space<vmem>>, vector<1x8x1x16xf32>,
    %62 = vector.extract_strided_slice %57 {offsets = [0, 18], sizes = [8, 16], strides = [1, 1]} : vector<8x286xf32> to vector<8x16xf32>
    %c0_63 = arith.constant 0 : index
    %c0_64 = arith.constant 0 : index
    %c1_65 = arith.constant 1 : index
    %c0_66 = arith.constant 0 : index
    %63 = vector.load %arg5[%c0_63, %c0_64, %c1_65, %c0_66] : memref<1x8x16x16xf32, #tpu.memory_space<vmem>>, vector<1x8x1x16xf32>
    %64 = vector.shape_cast %63 : vector<1x8x1x16xf32> to vector<8x16xf32>
    %65 = vector.shape_cast %62 : vector<8x16xf32> to vector<1x8x1x16xf32>
    tpu.vector_store %arg5[%c0_63, %c0_64, %c1_65, %c0_66], %65 {strides = array<i32>} : memref<1x8x16x16xf32, #tpu.memory_space<vmem>>, vector<1x8x1x16xf32>,
    %66 = vector.extract_strided_slice %57 {offsets = [0, 36], sizes = [8, 16], strides = [1, 1]} : vector<8x286xf32> to vector<8x16xf32>
    %c0_67 = arith.constant 0 : index
    %c0_68 = arith.constant 0 : index
    %c2_69 = arith.constant 2 : index
    %c0_70 = arith.constant 0 : index
    %67 = vector.load %arg5[%c0_67, %c0_68, %c2_69, %c0_70] : memref<1x8x16x16xf32, #tpu.memory_space<vmem>>, vector<1x8x1x16xf32>
    %68 = vector.shape_cast %67 : vector<1x8x1x16xf32> to vector<8x16xf32>
    %69 = vector.shape_cast %66 : vector<8x16xf32> to vector<1x8x1x16xf32>
    tpu.vector_store %arg5[%c0_67, %c0_68, %c2_69, %c0_70], %69 {strides = array<i32>} : memref<1x8x16x16xf32, #tpu.memory_space<vmem>>, vector<1x8x1x16xf32>,
    %70 = vector.extract_strided_slice %57 {offsets = [0, 54], sizes = [8, 16], strides = [1, 1]} : vector<8x286xf32> to vector<8x16xf32>
    %c0_71 = arith.constant 0 : index
    %c0_72 = arith.constant 0 : index
    %c3_73 = arith.constant 3 : index
    %c0_74 = arith.constant 0 : index
    %71 = vector.load %arg5[%c0_71, %c0_72, %c3_73, %c0_74] : memref<1x8x16x16xf32, #tpu.memory_space<vmem>>, vector<1x8x1x16xf32>
    %72 = vector.shape_cast %71 : vector<1x8x1x16xf32> to vector<8x16xf32>
    %73 = vector.shape_cast %70 : vector<8x16xf32> to vector<1x8x1x16xf32>
    tpu.vector_store %arg5[%c0_71, %c0_72, %c3_73, %c0_74], %73 {strides = array<i32>} : memref<1x8x16x16xf32, #tpu.memory_space<vmem>>, vector<1x8x1x16xf32>,
    %74 = vector.extract_strided_slice %57 {offsets = [0, 72], sizes = [8, 16], strides = [1, 1]} : vector<8x286xf32> to vector<8x16xf32>
    %c0_75 = arith.constant 0 : index
    %c0_76 = arith.constant 0 : index
    %c4_77 = arith.constant 4 : index
    %c0_78 = arith.constant 0 : index
    %75 = vector.load %arg5[%c0_75, %c0_76, %c4_77, %c0_78] : memref<1x8x16x16xf32, #tpu.memory_space<vmem>>, vector<1x8x1x16xf32>
    %76 = vector.shape_cast %75 : vector<1x8x1x16xf32> to vector<8x16xf32>
    %77 = vector.shape_cast %74 : vector<8x16xf32> to vector<1x8x1x16xf32>
    tpu.vector_store %arg5[%c0_75, %c0_76, %c4_77, %c0_78], %77 {strides = array<i32>} : memref<1x8x16x16xf32, #tpu.memory_space<vmem>>, vector<1x8x1x16xf32>,
    %78 = vector.extract_strided_slice %57 {offsets = [0, 90], sizes = [8, 16], strides = [1, 1]} : vector<8x286xf32> to vector<8x16xf32>
    %c0_79 = arith.constant 0 : index
    %c0_80 = arith.constant 0 : index
    %c5_81 = arith.constant 5 : index
    %c0_82 = arith.constant 0 : index
    %79 = vector.load %arg5[%c0_79, %c0_80, %c5_81, %c0_82] : memref<1x8x16x16xf32, #tpu.memory_space<vmem>>, vector<1x8x1x16xf32>
    %80 = vector.shape_cast %79 : vector<1x8x1x16xf32> to vector<8x16xf32>
    %81 = vector.shape_cast %78 : vector<8x16xf32> to vector<1x8x1x16xf32>
    tpu.vector_store %arg5[%c0_79, %c0_80, %c5_81, %c0_82], %81 {strides = array<i32>} : memref<1x8x16x16xf32, #tpu.memory_space<vmem>>, vector<1x8x1x16xf32>,
    %82 = vector.extract_strided_slice %57 {offsets = [0, 108], sizes = [8, 16], strides = [1, 1]} : vector<8x286xf32> to vector<8x16xf32>
    %c0_83 = arith.constant 0 : index
    %c0_84 = arith.constant 0 : index
    %c6_85 = arith.constant 6 : index
    %c0_86 = arith.constant 0 : index
    %83 = vector.load %arg5[%c0_83, %c0_84, %c6_85, %c0_86] : memref<1x8x16x16xf32, #tpu.memory_space<vmem>>, vector<1x8x1x16xf32>
    %84 = vector.shape_cast %83 : vector<1x8x1x16xf32> to vector<8x16xf32>
    %85 = vector.shape_cast %82 : vector<8x16xf32> to vector<1x8x1x16xf32>
    tpu.vector_store %arg5[%c0_83, %c0_84, %c6_85, %c0_86], %85 {strides = array<i32>} : memref<1x8x16x16xf32, #tpu.memory_space<vmem>>, vector<1x8x1x16xf32>,
    %86 = vector.extract_strided_slice %57 {offsets = [0, 126], sizes = [8, 16], strides = [1, 1]} : vector<8x286xf32> to vector<8x16xf32>
    %c0_87 = arith.constant 0 : index
    %c0_88 = arith.constant 0 : index
    %c7_89 = arith.constant 7 : index
    %c0_90 = arith.constant 0 : index
    %87 = vector.load %arg5[%c0_87, %c0_88, %c7_89, %c0_90] : memref<1x8x16x16xf32, #tpu.memory_space<vmem>>, vector<1x8x1x16xf32>
    %88 = vector.shape_cast %87 : vector<1x8x1x16xf32> to vector<8x16xf32>
    %89 = vector.shape_cast %86 : vector<8x16xf32> to vector<1x8x1x16xf32>
    tpu.vector_store %arg5[%c0_87, %c0_88, %c7_89, %c0_90], %89 {strides = array<i32>} : memref<1x8x16x16xf32, #tpu.memory_space<vmem>>, vector<1x8x1x16xf32>,
    %90 = vector.extract_strided_slice %57 {offsets = [0, 144], sizes = [8, 16], strides = [1, 1]} : vector<8x286xf32> to vector<8x16xf32>
    %c0_91 = arith.constant 0 : index
    %c0_92 = arith.constant 0 : index
    %c8_93 = arith.constant 8 : index
    %c0_94 = arith.constant 0 : index
    %91 = vector.load %arg5[%c0_91, %c0_92, %c8_93, %c0_94] : memref<1x8x16x16xf32, #tpu.memory_space<vmem>>, vector<1x8x1x16xf32>
    %92 = vector.shape_cast %91 : vector<1x8x1x16xf32> to vector<8x16xf32>
    %93 = vector.shape_cast %90 : vector<8x16xf32> to vector<1x8x1x16xf32>
    tpu.vector_store %arg5[%c0_91, %c0_92, %c8_93, %c0_94], %93 {strides = array<i32>} : memref<1x8x16x16xf32, #tpu.memory_space<vmem>>, vector<1x8x1x16xf32>,
    %94 = vector.extract_strided_slice %57 {offsets = [0, 162], sizes = [8, 16], strides = [1, 1]} : vector<8x286xf32> to vector<8x16xf32>
    %c0_95 = arith.constant 0 : index
    %c0_96 = arith.constant 0 : index
    %c9 = arith.constant 9 : index
    %c0_97 = arith.constant 0 : index
    %95 = vector.load %arg5[%c0_95, %c0_96, %c9, %c0_97] : memref<1x8x16x16xf32, #tpu.memory_space<vmem>>, vector<1x8x1x16xf32>
    %96 = vector.shape_cast %95 : vector<1x8x1x16xf32> to vector<8x16xf32>
    %97 = vector.shape_cast %94 : vector<8x16xf32> to vector<1x8x1x16xf32>
    tpu.vector_store %arg5[%c0_95, %c0_96, %c9, %c0_97], %97 {strides = array<i32>} : memref<1x8x16x16xf32, #tpu.memory_space<vmem>>, vector<1x8x1x16xf32>,
    %98 = vector.extract_strided_slice %57 {offsets = [0, 180], sizes = [8, 16], strides = [1, 1]} : vector<8x286xf32> to vector<8x16xf32>
    %c0_98 = arith.constant 0 : index
    %c0_99 = arith.constant 0 : index
    %c10 = arith.constant 10 : index
    %c0_100 = arith.constant 0 : index
    %99 = vector.load %arg5[%c0_98, %c0_99, %c10, %c0_100] : memref<1x8x16x16xf32, #tpu.memory_space<vmem>>, vector<1x8x1x16xf32>
    %100 = vector.shape_cast %99 : vector<1x8x1x16xf32> to vector<8x16xf32>
    %101 = vector.shape_cast %98 : vector<8x16xf32> to vector<1x8x1x16xf32>
    tpu.vector_store %arg5[%c0_98, %c0_99, %c10, %c0_100], %101 {strides = array<i32>} : memref<1x8x16x16xf32, #tpu.memory_space<vmem>>, vector<1x8x1x16xf32>,
    %102 = vector.extract_strided_slice %57 {offsets = [0, 198], sizes = [8, 16], strides = [1, 1]} : vector<8x286xf32> to vector<8x16xf32>
    %c0_101 = arith.constant 0 : index
    %c0_102 = arith.constant 0 : index
    %c11 = arith.constant 11 : index
    %c0_103 = arith.constant 0 : index
    %103 = vector.load %arg5[%c0_101, %c0_102, %c11, %c0_103] : memref<1x8x16x16xf32, #tpu.memory_space<vmem>>, vector<1x8x1x16xf32>
    %104 = vector.shape_cast %103 : vector<1x8x1x16xf32> to vector<8x16xf32>
    %105 = vector.shape_cast %102 : vector<8x16xf32> to vector<1x8x1x16xf32>
    tpu.vector_store %arg5[%c0_101, %c0_102, %c11, %c0_103], %105 {strides = array<i32>} : memref<1x8x16x16xf32, #tpu.memory_space<vmem>>, vector<1x8x1x16xf32>,
    %106 = vector.extract_strided_slice %57 {offsets = [0, 216], sizes = [8, 16], strides = [1, 1]} : vector<8x286xf32> to vector<8x16xf32>
    %c0_104 = arith.constant 0 : index
    %c0_105 = arith.constant 0 : index
    %c12 = arith.constant 12 : index
    %c0_106 = arith.constant 0 : index
    %107 = vector.load %arg5[%c0_104, %c0_105, %c12, %c0_106] : memref<1x8x16x16xf32, #tpu.memory_space<vmem>>, vector<1x8x1x16xf32>
    %108 = vector.shape_cast %107 : vector<1x8x1x16xf32> to vector<8x16xf32>
    %109 = vector.shape_cast %106 : vector<8x16xf32> to vector<1x8x1x16xf32>
    tpu.vector_store %arg5[%c0_104, %c0_105, %c12, %c0_106], %109 {strides = array<i32>} : memref<1x8x16x16xf32, #tpu.memory_space<vmem>>, vector<1x8x1x16xf32>,
    %110 = vector.extract_strided_slice %57 {offsets = [0, 234], sizes = [8, 16], strides = [1, 1]} : vector<8x286xf32> to vector<8x16xf32>
    %c0_107 = arith.constant 0 : index
    %c0_108 = arith.constant 0 : index
    %c13 = arith.constant 13 : index
    %c0_109 = arith.constant 0 : index
    %111 = vector.load %arg5[%c0_107, %c0_108, %c13, %c0_109] : memref<1x8x16x16xf32, #tpu.memory_space<vmem>>, vector<1x8x1x16xf32>
    %112 = vector.shape_cast %111 : vector<1x8x1x16xf32> to vector<8x16xf32>
    %113 = vector.shape_cast %110 : vector<8x16xf32> to vector<1x8x1x16xf32>
    tpu.vector_store %arg5[%c0_107, %c0_108, %c13, %c0_109], %113 {strides = array<i32>} : memref<1x8x16x16xf32, #tpu.memory_space<vmem>>, vector<1x8x1x16xf32>,
    %114 = vector.extract_strided_slice %57 {offsets = [0, 252], sizes = [8, 16], strides = [1, 1]} : vector<8x286xf32> to vector<8x16xf32>
    %c0_110 = arith.constant 0 : index
    %c0_111 = arith.constant 0 : index
    %c14 = arith.constant 14 : index
    %c0_112 = arith.constant 0 : index
    %115 = vector.load %arg5[%c0_110, %c0_111, %c14, %c0_112] : memref<1x8x16x16xf32, #tpu.memory_space<vmem>>, vector<1x8x1x16xf32>
    %116 = vector.shape_cast %115 : vector<1x8x1x16xf32> to vector<8x16xf32>
    %117 = vector.shape_cast %114 : vector<8x16xf32> to vector<1x8x1x16xf32>
    tpu.vector_store %arg5[%c0_110, %c0_111, %c14, %c0_112], %117 {strides = array<i32>} : memref<1x8x16x16xf32, #tpu.memory_space<vmem>>, vector<1x8x1x16xf32>,
    %118 = vector.extract_strided_slice %57 {offsets = [0, 270], sizes = [8, 16], strides = [1, 1]} : vector<8x286xf32> to vector<8x16xf32>
    %c0_113 = arith.constant 0 : index
    %c0_114 = arith.constant 0 : index
    %c15 = arith.constant 15 : index
    %c0_115 = arith.constant 0 : index
    %119 = vector.load %arg5[%c0_113, %c0_114, %c15, %c0_115] : memref<1x8x16x16xf32, #tpu.memory_space<vmem>>, vector<1x8x1x16xf32>
    %120 = vector.shape_cast %119 : vector<1x8x1x16xf32> to vector<8x16xf32>
    %121 = vector.shape_cast %118 : vector<8x16xf32> to vector<1x8x1x16xf32>
    tpu.vector_store %arg5[%c0_113, %c0_114, %c15, %c0_115], %121 {strides = array<i32>} : memref<1x8x16x16xf32, #tpu.memory_space<vmem>>, vector<1x8x1x16xf32>,
    return
  }
  func.func @transform_0(%arg0: i32, %arg1: i32) -> (i32, i32, i32, i32) {
    %c0_i32 = arith.constant 0 : i32
    %c0_i32_0 = arith.constant 0 : i32
    %c0_i32_1 = arith.constant 0 : i32
    return %arg0, %arg1, %c0_i32, %c0_i32_0 : i32, i32, i32, i32
  }
  func.func @transform_1(%arg0: i32, %arg1: i32) -> (i32, i32, i32) {
    %c0_i32 = arith.constant 0 : i32
    %c0_i32_0 = arith.constant 0 : i32
    %c0_i32_1 = arith.constant 0 : i32
    %c0_i32_2 = arith.constant 0 : i32
    return %c0_i32, %c0_i32_0, %c0_i32_1 : i32, i32, i32
  }
  func.func @transform_2(%arg0: i32, %arg1: i32) -> (i32, i32) {
    %c0_i32 = arith.constant 0 : i32
    %c0_i32_0 = arith.constant 0 : i32
    %c0_i32_1 = arith.constant 0 : i32
    return %c0_i32, %c0_i32_0 : i32, i32
  }
  func.func @transform_3(%arg0: i32, %arg1: i32) -> (i32, i32, i32, i32) {
    %c0_i32 = arith.constant 0 : i32
    %c0_i32_0 = arith.constant 0 : i32
    %c0_i32_1 = arith.constant 0 : i32
    return %arg0, %c0_i32, %arg1, %c0_i32_0 : i32, i32, i32, i32
  }
}

</mosaic_0001>

<llo_original>
// kernel: conv_layer_forward.1
$region0: #{conv_layer_forward.1}
  #allocation0 [shape = 'u32[]', space=smem, size = 0x4, offset = 0x4, fixed_abs, tag = 'smem constant byte address 0x4 - core index']
  #allocation1 [shape = 'u32[72,128]{1,0:T(1,128)}', space=vmem, size = 0x9000, scoped, tag = 'internal scratch']
  %s0 = inlined_call_operand.vmem [shape: bf16[2,1,4,324], index: 0, kind: input, shape index: {}]
  %s1 = inlined_call_operand.vmem [shape: bf16[9,8,4], index: 1, kind: input, shape index: {}]
  %s2 = inlined_call_operand.vmem [shape: f32[8,1], index: 2, kind: input, shape index: {}]
  %s3 = inlined_call_operand.hbm [shape: f32[2,8,16,16], index: 3, kind: output, shape index: {}]
  %s4 = sld [smem:[#allocation0]]
  $region45: #{conv_layer_forward.1} parent=0
    _
  %s6 = ssub.s32 1, %s4
  %s7 = scalar_select 0, %s6, %s4
  $region1: #{conv_layer_forward.1} parent=0
    #allocation2 [shape = 'u8[131072]{0}', space=vmem, size = 0x20000, scoped, tag = 'output window, operand 0']
    #allocation3 [shape = 's32[2]{0}', space=sflag, size = 0x8, scoped, tag = 'scoped memory for conv_layer_forward.1']
    %8 = vsyncpa [#allocation3], 0
    %s9 = scalar_lea.sflag [#allocation3], 1
    %10 = vsyncpa %s9, 0
    loop: start=0, step=1, limit=4
    $region2: #{conv_layer_forward.1} parent=1 // loop_pre_header
      _
    $region3: #{conv_layer_forward.1} parent=1 // loop_header
      %s12 = sphi 0, %s16
      %p13 = scmp.ge.s32.totalorder %s12, 4
      %s19 = sphi 0, %s31
      %s20 = sphi 0, %s27
      %s21 = sphi 0, %s19
      %s22 = sphi 0, %s20
      %s23 = sphi 0, %s21
      %s24 = sphi 0, %s22
      %s36 = sphi 0, %s38
      %s39 = sphi 0, %s36
      %s40 = sphi 0, %s39
      %s56 = sphi 0, %s40
      %s60 = sphi 0, %s60
      %s62 = sphi 0, %s60
      %s63 = sphi 0, %s62
      %s77 = sphi 0, %s63
      %s81 = sphi 0, %s81
      %s83 = sphi 0, %s81
      %s84 = sphi 0, %s83
      %s98 = sphi 0, %s84
      %s106 = sphi 0, %s108
      %s109 = sphi 0, %s106
      %s110 = sphi 0, %s109
      %s126 = sphi 0, %s110
    $region4: #{conv_layer_forward.1} parent=1 // loop_header_branch
      %15 = sbr.rel (%p13) target = $region8
    $region5: #{conv_layer_forward.1} parent=1 // loop_body
      %s17 = ssub.s32 %s12, 1
      %s18 = ssub.s32 %s12, 2
      %s25 = sadd.s32 1, %s20
      %p26 = scmp.ge.s32.totalorder %s25, 1
      %s27 = scalar_select %p26, 0, %s25
      %s28 = sadd.s32 1, %s19
      %s29 = scalar_select %p26, %s28, %s19
      %p30 = scmp.ge.s32.totalorder %s29, 2
      %s31 = scalar_select %p30, 0, %s29
      %s32 = ssub.s32 %s19, %s31
      %s33 = ssub.s32 %s20, %s27
      %s34 = sor.u32 %s32, %s33
      %p35 = scmp.eq.s32.totalorder %s34, 0
      %s37 = sadd.s32 %s36, 1
      %s38 = scalar_select %p35, %s36, %s37
      %p41 = pneg %p35
      %p42 = scmp.eq.s32.totalorder %s12, 1
      %p43 = por %p41, %p42
      %p44 = scmp.ne.s32.totalorder %s36, %s39
      %p45 = scmp.eq.s32.totalorder %s12, 0
      %p46 = por %p44, %p45
      %p47 = scmp.ne.s32.totalorder %s36, %s39
      %p48 = scmp.eq.s32.totalorder %s17, 1
      %p49 = por %p47, %p48
      %p50 = scmp.ne.s32.totalorder %s39, %s40
      %p51 = scmp.eq.s32.totalorder %s17, 0
      %p52 = por %p50, %p51
      %p53 = scmp.ne.s32.totalorder %s39, %s40
      %p54 = scmp.eq.s32.totalorder %s18, 1
      %p55 = por %p53, %p54
      %p57 = scmp.ne.s32.totalorder %s40, %s56
      %p58 = scmp.eq.s32.totalorder %s18, 0
      %p59 = por %p57, %p58
      %s61 = sadd.s32 %s60, 1
      %p64 = scmp.eq.s32.totalorder %s12, 1
      %p65 = scmp.ne.s32.totalorder %s60, %s62
      %p66 = scmp.eq.s32.totalorder %s12, 0
      %p67 = por %p65, %p66
      %p68 = scmp.ne.s32.totalorder %s60, %s62
      %p69 = scmp.eq.s32.totalorder %s17, 1
      %p70 = por %p68, %p69
      %p71 = scmp.ne.s32.totalorder %s62, %s63
      %p72 = scmp.eq.s32.totalorder %s17, 0
      %p73 = por %p71, %p72
      %p74 = scmp.ne.s32.totalorder %s62, %s63
      %p75 = scmp.eq.s32.totalorder %s18, 1
      %p76 = por %p74, %p75
      %p78 = scmp.ne.s32.totalorder %s63, %s77
      %p79 = scmp.eq.s32.totalorder %s18, 0
      %p80 = por %p78, %p79
      %s82 = sadd.s32 %s81, 1
      %p85 = scmp.eq.s32.totalorder %s12, 1
      %p86 = scmp.ne.s32.totalorder %s81, %s83
      %p87 = scmp.eq.s32.totalorder %s12, 0
      %p88 = por %p86, %p87
      %p89 = scmp.ne.s32.totalorder %s81, %s83
      %p90 = scmp.eq.s32.totalorder %s17, 1
      %p91 = por %p89, %p90
      %p92 = scmp.ne.s32.totalorder %s83, %s84
      %p93 = scmp.eq.s32.totalorder %s17, 0
      %p94 = por %p92, %p93
      %p95 = scmp.ne.s32.totalorder %s83, %s84
      %p96 = scmp.eq.s32.totalorder %s18, 1
      %p97 = por %p95, %p96
      %p99 = scmp.ne.s32.totalorder %s84, %s98
      %p100 = scmp.eq.s32.totalorder %s18, 0
      %p101 = por %p99, %p100
      %s102 = ssub.s32 %s19, %s31
      %s103 = ssub.s32 %s20, %s27
      %s104 = sor.u32 %s102, %s103
      %p105 = scmp.eq.s32.totalorder %s104, 0
      %s107 = sadd.s32 %s106, 1
      %s108 = scalar_select %p105, %s106, %s107
      %p111 = pneg %p105
      %p112 = scmp.eq.s32.totalorder %s12, 1
      %p113 = por %p111, %p112
      %p114 = scmp.ne.s32.totalorder %s106, %s109
      %p115 = scmp.eq.s32.totalorder %s12, 0
      %p116 = por %p114, %p115
      %p117 = scmp.ne.s32.totalorder %s106, %s109
      %p118 = scmp.eq.s32.totalorder %s17, 1
      %p119 = por %p117, %p118
      %p120 = scmp.ne.s32.totalorder %s109, %s110
      %p121 = scmp.eq.s32.totalorder %s17, 0
      %p122 = por %p120, %p121
      %p123 = scmp.ne.s32.totalorder %s109, %s110
      %p124 = scmp.eq.s32.totalorder %s18, 1
      %p125 = por %p123, %p124
      %p127 = scmp.ne.s32.totalorder %s110, %s126
      %p128 = scmp.eq.s32.totalorder %s18, 0
      %p129 = por %p127, %p128
      %p130 = scmp.le.s32.totalorder 1, %s12
      %p131 = scmp.lt.s32.totalorder %s12, 3
      %p132 = pnand %p130, %p131
      %p133 = pneg %p132
      // Predicated region
      $region9: #{conv_layer_forward.1} parent=5 // pred_check
        _
      $region10: #{conv_layer_forward.1} parent=5 // pred_check_branch
        %135 = sbr.rel (%p132) target = $region12
      $region11: #{conv_layer_forward.1} parent=5 // pred_region
        %s136 = ssub.s32 %s12, 1
        // Predicated region
        $region13: #{conv_layer_forward.1} parent=11 // pred_check
          %p137 = pneg %p73
        $region14: #{conv_layer_forward.1} parent=11 // pred_check_branch
          %139 = sbr.rel (%p137) target = $region16
        $region15: #{conv_layer_forward.1} parent=11 // pred_region
          _
        $region16: #{conv_layer_forward.1} parent=11 // pred_fallthru
          _
        // Predicated region
        $region17: #{conv_layer_forward.1} parent=11 // pred_check
          %p140 = pneg %p94
        $region18: #{conv_layer_forward.1} parent=11 // pred_check_branch
          %142 = sbr.rel (%p140) target = $region20
        $region19: #{conv_layer_forward.1} parent=11 // pred_region
          _
        $region20: #{conv_layer_forward.1} parent=11 // pred_fallthru
          _
      $region12: #{conv_layer_forward.1} parent=5 // pred_fallthru
        _
      %p143 = scmp.lt.s32.totalorder %s12, 2
      // Predicated region
      $region21: #{conv_layer_forward.1} parent=5 // pred_check
        %p144 = pneg %p143
      $region22: #{conv_layer_forward.1} parent=5 // pred_check_branch
        %146 = sbr.rel (%p144) target = $region24
      $region23: #{conv_layer_forward.1} parent=5 // pred_region
        // Predicated region
        $region25: #{conv_layer_forward.1} parent=23 // pred_check
          %p147 = pneg %p46
        $region26: #{conv_layer_forward.1} parent=23 // pred_check_branch
          %149 = sbr.rel (%p147) target = $region28
        $region27: #{conv_layer_forward.1} parent=23 // pred_region
          %p150 = scmp.lt.s32.totalorder %s19, 1
          %s151 = scalar_select %p150, %s19, 1
          %p152 = scmp.lt.s32.totalorder %s20, 0
          %s153 = scalar_select %p152, %s20, 0
          %s154 = smul.addr %s153, 3
          %s155 = smul.addr %s151, 3
          %s156 = sadd.s32 %s154, %s155
          %s157 = smul.addr %s156, 2
          %s158 = scalar_lea.vmem %s0, %s157
        $region28: #{conv_layer_forward.1} parent=23 // pred_fallthru
          _
      $region24: #{conv_layer_forward.1} parent=5 // pred_fallthru
        _
      %p159 = scmp.le.s32.totalorder 1, %s12
      %p160 = scmp.lt.s32.totalorder %s12, 3
      %p161 = pnand %p159, %p160
      %p162 = pneg %p161
      // Predicated region
      $region29: #{conv_layer_forward.1} parent=5 // pred_check
        _
      $region30: #{conv_layer_forward.1} parent=5 // pred_check_branch
        %164 = sbr.rel (%p161) target = $region32
      $region31: #{conv_layer_forward.1} parent=5 // pred_region
        %s165 = ssub.s32 %s12, 1
        %p166 = scmp.lt.s32.totalorder %s21, 1
        %s167 = scalar_select %p166, %s21, 1
        %p168 = scmp.lt.s32.totalorder %s22, 0
        %s169 = scalar_select %p168, %s22, 0
        %s170 = smul.addr %s169, 3
        %s171 = smul.addr %s167, 3
        %s172 = sadd.s32 %s170, %s171
        %s173 = smul.addr %s172, 2
        %s174 = scalar_lea.vmem %s0, %s173
        %p175 = pneg %p52
        %p176 = pneg %p49
        %p177 = pneg %p73
        %p178 = pneg %p70
        %p179 = pneg %p94
        %p180 = pneg %p91
        %p181 = pneg %p122
        %p182 = pneg %p119
        %s183 = sand.u32 %s109, 1
        %s184 = scalar_lea.sflag [#allocation3], %s183
        %s185 = sand.u32 %s109, 1
        %s186 = smul.addr %s185, 128
        %s187 = scalar_lea.vmem [#allocation2], %s186
        %p188 = scmp.lt.s32.totalorder %s21, 1
        %s189 = scalar_select %p188, %s21, 1
        %p190 = scmp.lt.s32.totalorder %s22, 0
        %s191 = scalar_select %p190, %s22, 0
        %s192 = smul.addr %s191, 3
        %s193 = smul.addr %s189, 3
        %s194 = sadd.s32 %s192, %s193
        %s195 = smul.addr %s194, 2
        %s196 = scalar_lea.vmem %s0, %s195
        %s197 = smul.u32 2, %s22
        %v199 = vld [vmem:[%s196] sm:$0x3f]
        %v200 = vld [vmem:[%s1] sm:$0xf]
        %s201 = scalar_lea.vmem %s1, 4
        %v202 = vld [vmem:[%s201] sm:$0xf]
        %204 = vst [vmem:[#allocation1] ss:$4 sm:$0xff] %v199
        %v205 = vld.sshfl [vmem:[#allocation1] sm:$0xff pattern:$0x73625140]
        %v207 = vld.sshfl [vmem:[#allocation1 + $0x8] sm:$0xff pattern:$0x73625140]
        %v209 = vld.sshfl [vmem:[#allocation1 + $0x10] sm:$0xff pattern:$0x73625140]
        %211 = vrot.lane.b32.xlu0 %v205, 127
        %v212 = vpop.permute.xlu0 %211
        %213 = vrot.lane.b32.xlu0 %v207, 127
        %v214 = vpop.permute.xlu0 %213
        %215 = vrot.lane.b32.xlu0 %v209, 127
        %v216 = vpop.permute.xlu0 %215
        %vm217 = vcmask 1039360
        %v218 = vsel %vm217, %v212, %v214
        %v219 = vsel %vm217, %v214, %v216
        %vm220 = vcmask 31744
        %v222 = vsel %vm220, %v202, 0
        %vm224 = vcmask 1041408
        %v226 = vsel %vm224, %v218, 0
        %v229 = vsel %vm224, %v219, 0
        %v232 = vsel %vm224, %v216, 0
        %234 = vmatpush.bf16.msra.mxu0 0
        %235 = vmatpush.bf16.msra.mxu0 0
        %236 = vmatpush.bf16.msra.mxu0 0
        %237 = vmatpush.bf16.msra.mxu0 0
        %238 = vmatpush.bf16.msra.mxu0 0
        %239 = vmatpush.bf16.msra.mxu0 0
        %240 = vmatpush.bf16.msra.mxu0 0
        %241 = vmatpush.bf16.msra.mxu0 %v226
        %242 = vmatmul.bf16.gmra.mxu0 %v222
        %v243 = vpop.f32.mrf.mxu0
        %v244 = vadd.f32 0.0, %v243
        %v245 = vpop.f32.mrf.mxu0
        %246 = vdwg.mxu0
        %247 = vmatpush.bf16.msra.mxu0 0
        %248 = vmatpush.bf16.msra.mxu0 0
        %249 = vmatpush.bf16.msra.mxu0 0
        %250 = vmatpush.bf16.msra.mxu0 0
        %251 = vmatpush.bf16.msra.mxu0 0
        %252 = vmatpush.bf16.msra.mxu0 0
        %253 = vmatpush.bf16.msra.mxu0 0
        %254 = vmatpush.bf16.msra.mxu0 %v229
        %255 = vmatmul.bf16.gmra.mxu0 %v222
        %v256 = vpop.f32.mrf.mxu0
        %v257 = vadd.f32 0.0, %v256
        %v258 = vpop.f32.mrf.mxu0
        %259 = vdwg.mxu0
        %260 = vmatpush.bf16.msra.mxu0 0
        %261 = vmatpush.bf16.msra.mxu0 0
        %262 = vmatpush.bf16.msra.mxu0 0
        %263 = vmatpush.bf16.msra.mxu0 0
        %264 = vmatpush.bf16.msra.mxu0 0
        %265 = vmatpush.bf16.msra.mxu0 0
        %266 = vmatpush.bf16.msra.mxu0 0
        %267 = vmatpush.bf16.msra.mxu0 %v232
        %268 = vmatmul.bf16.gmra.mxu0 %v222
        %v269 = vpop.f32.mrf.mxu0
        %v270 = vadd.f32 0.0, %v269
        %v271 = vpop.f32.mrf.mxu0
        %272 = vdwg.mxu0
        %273 = vst [vmem:[#allocation1] ss:$4 sm:$0xff] %v199
        %v274 = vld.sshfl [vmem:[#allocation1] sm:$0xff pattern:$0x73625140]
        %v275 = vld.sshfl [vmem:[#allocation1 + $0x8] sm:$0xff pattern:$0x73625140]
        %v276 = vld.sshfl [vmem:[#allocation1 + $0x10] sm:$0xff pattern:$0x73625140]
        %v278 = vsel %vm220, %v200, 0
        %v280 = vsel %vm224, %v274, 0
        %v282 = vsel %vm224, %v275, 0
        %v284 = vsel %vm224, %v276, 0
        %286 = vmatpush.bf16.msra.mxu0 0
        %287 = vmatpush.bf16.msra.mxu0 0
        %288 = vmatpush.bf16.msra.mxu0 0
        %289 = vmatpush.bf16.msra.mxu0 0
        %290 = vmatpush.bf16.msra.mxu0 0
        %291 = vmatpush.bf16.msra.mxu0 0
        %292 = vmatpush.bf16.msra.mxu0 0
        %293 = vmatpush.bf16.msra.mxu0 %v280
        %294 = vmatmul.bf16.gmra.mxu0 %v278
        %v295 = vpop.f32.mrf.mxu0
        %v296 = vadd.f32 %v244, %v295
        %v297 = vpop.f32.mrf.mxu0
        %298 = vdwg.mxu0
        %299 = vmatpush.bf16.msra.mxu0 0
        %300 = vmatpush.bf16.msra.mxu0 0
        %301 = vmatpush.bf16.msra.mxu0 0
        %302 = vmatpush.bf16.msra.mxu0 0
        %303 = vmatpush.bf16.msra.mxu0 0
        %304 = vmatpush.bf16.msra.mxu0 0
        %305 = vmatpush.bf16.msra.mxu0 0
        %306 = vmatpush.bf16.msra.mxu0 %v282
        %307 = vmatmul.bf16.gmra.mxu0 %v278
        %v308 = vpop.f32.mrf.mxu0
        %v309 = vadd.f32 %v257, %v308
        %v310 = vpop.f32.mrf.mxu0
        %311 = vdwg.mxu0
        %312 = vmatpush.bf16.msra.mxu0 0
        %313 = vmatpush.bf16.msra.mxu0 0
        %314 = vmatpush.bf16.msra.mxu0 0
        %315 = vmatpush.bf16.msra.mxu0 0
        %316 = vmatpush.bf16.msra.mxu0 0
        %317 = vmatpush.bf16.msra.mxu0 0
        %318 = vmatpush.bf16.msra.mxu0 0
        %319 = vmatpush.bf16.msra.mxu0 %v284
        %320 = vmatmul.bf16.gmra.mxu0 %v278
        %v321 = vpop.f32.mrf.mxu0
        %v322 = vadd.f32 %v270, %v321
        %v323 = vpop.f32.mrf.mxu0
        %324 = vdwg.mxu0
        %v325 = vld [vmem:[%s196] sm:$0x3f]
        %s326 = scalar_lea.vmem %s1, 8
        %v327 = vld [vmem:[%s326] sm:$0xf]
        %329 = vst [vmem:[#allocation1] ss:$4 sm:$0xff] %v325
        %v330 = vld.sshfl [vmem:[#allocation1] sm:$0xff pattern:$0x73625140]
        %v332 = vld.sshfl [vmem:[#allocation1 + $0x8] sm:$0xff pattern:$0x73625140]
        %v334 = vld.sshfl [vmem:[#allocation1 + $0x10] sm:$0xff pattern:$0x73625140]
        %336 = vrot.lane.b32.xlu0 %v330, 126
        %v337 = vpop.permute.xlu0 %336
        %338 = vrot.lane.b32.xlu0 %v332, 126
        %v339 = vpop.permute.xlu0 %338
        %340 = vrot.lane.b32.xlu0 %v334, 126
        %v341 = vpop.permute.xlu0 %340
        %vm342 = vcmask 1031168
        %v343 = vsel %vm342, %v337, %v339
        %v344 = vsel %vm342, %v339, %v341
        %v346 = vsel %vm220, %v327, 0
        %v349 = vsel %vm224, %v343, 0
        %v352 = vsel %vm224, %v344, 0
        %v355 = vsel %vm224, %v341, 0
        %357 = vmatpush.bf16.msra.mxu0 0
        %358 = vmatpush.bf16.msra.mxu0 0
        %359 = vmatpush.bf16.msra.mxu0 0
        %360 = vmatpush.bf16.msra.mxu0 0
        %361 = vmatpush.bf16.msra.mxu0 0
        %362 = vmatpush.bf16.msra.mxu0 0
        %363 = vmatpush.bf16.msra.mxu0 0
        %364 = vmatpush.bf16.msra.mxu0 %v349
        %365 = vmatmul.bf16.gmra.mxu0 %v346
        %v366 = vpop.f32.mrf.mxu0
        %v367 = vadd.f32 0.0, %v366
        %v368 = vpop.f32.mrf.mxu0
        %369 = vdwg.mxu0
        %370 = vmatpush.bf16.msra.mxu0 0
        %371 = vmatpush.bf16.msra.mxu0 0
        %372 = vmatpush.bf16.msra.mxu0 0
        %373 = vmatpush.bf16.msra.mxu0 0
        %374 = vmatpush.bf16.msra.mxu0 0
        %375 = vmatpush.bf16.msra.mxu0 0
        %376 = vmatpush.bf16.msra.mxu0 0
        %377 = vmatpush.bf16.msra.mxu0 %v352
        %378 = vmatmul.bf16.gmra.mxu0 %v346
        %v379 = vpop.f32.mrf.mxu0
        %v380 = vadd.f32 0.0, %v379
        %v381 = vpop.f32.mrf.mxu0
        %382 = vdwg.mxu0
        %383 = vmatpush.bf16.msra.mxu0 0
        %384 = vmatpush.bf16.msra.mxu0 0
        %385 = vmatpush.bf16.msra.mxu0 0
        %386 = vmatpush.bf16.msra.mxu0 0
        %387 = vmatpush.bf16.msra.mxu0 0
        %388 = vmatpush.bf16.msra.mxu0 0
        %389 = vmatpush.bf16.msra.mxu0 0
        %390 = vmatpush.bf16.msra.mxu0 %v355
        %391 = vmatmul.bf16.gmra.mxu0 %v346
        %v392 = vpop.f32.mrf.mxu0
        %v393 = vadd.f32 0.0, %v392
        %v394 = vpop.f32.mrf.mxu0
        %395 = vdwg.mxu0
        %v396 = vadd.f32 %v296, %v367
        %v397 = vadd.f32 %v309, %v380
        %v398 = vadd.f32 %v322, %v393
        %v399 = vld [vmem:[%s196] sm:$0x3f]
        %s400 = scalar_lea.vmem %s1, 12
        %v401 = vld [vmem:[%s400] sm:$0xf]
        %403 = vst [vmem:[#allocation1] ss:$4 sm:$0xff] %v399
        %v404 = vld.sshfl [vmem:[#allocation1] sm:$0xff pattern:$0x73625140]
        %v406 = vld.sshfl [vmem:[#allocation1 + $0x8] sm:$0xff pattern:$0x73625140]
        %v408 = vld.sshfl [vmem:[#allocation1 + $0x10] sm:$0xff pattern:$0x73625140]
        %410 = vrot.lane.b32.xlu0 %v404, 110
        %v411 = vpop.permute.xlu0 %410
        %412 = vrot.lane.b32.xlu0 %v406, 110
        %v413 = vpop.permute.xlu0 %412
        %414 = vrot.lane.b32.xlu0 %v408, 110
        %v415 = vpop.permute.xlu0 %414
        %vm416 = vcmask 900096
        %v417 = vsel %vm416, %v411, %v413
        %v418 = vsel %vm416, %v413, %v415
        %v420 = vsel %vm220, %v401, 0
        %v423 = vsel %vm224, %v417, 0
        %v426 = vsel %vm224, %v418, 0
        %v429 = vsel %vm224, %v415, 0
        %431 = vmatpush.bf16.msra.mxu0 0
        %432 = vmatpush.bf16.msra.mxu0 0
        %433 = vmatpush.bf16.msra.mxu0 0
        %434 = vmatpush.bf16.msra.mxu0 0
        %435 = vmatpush.bf16.msra.mxu0 0
        %436 = vmatpush.bf16.msra.mxu0 0
        %437 = vmatpush.bf16.msra.mxu0 0
        %438 = vmatpush.bf16.msra.mxu0 %v423
        %439 = vmatmul.bf16.gmra.mxu0 %v420
        %v440 = vpop.f32.mrf.mxu0
        %v441 = vadd.f32 0.0, %v440
        %v442 = vpop.f32.mrf.mxu0
        %443 = vdwg.mxu0
        %444 = vmatpush.bf16.msra.mxu0 0
        %445 = vmatpush.bf16.msra.mxu0 0
        %446 = vmatpush.bf16.msra.mxu0 0
        %447 = vmatpush.bf16.msra.mxu0 0
        %448 = vmatpush.bf16.msra.mxu0 0
        %449 = vmatpush.bf16.msra.mxu0 0
        %450 = vmatpush.bf16.msra.mxu0 0
        %451 = vmatpush.bf16.msra.mxu0 %v426
        %452 = vmatmul.bf16.gmra.mxu0 %v420
        %v453 = vpop.f32.mrf.mxu0
        %v454 = vadd.f32 0.0, %v453
        %v455 = vpop.f32.mrf.mxu0
        %456 = vdwg.mxu0
        %457 = vmatpush.bf16.msra.mxu0 0
        %458 = vmatpush.bf16.msra.mxu0 0
        %459 = vmatpush.bf16.msra.mxu0 0
        %460 = vmatpush.bf16.msra.mxu0 0
        %461 = vmatpush.bf16.msra.mxu0 0
        %462 = vmatpush.bf16.msra.mxu0 0
        %463 = vmatpush.bf16.msra.mxu0 0
        %464 = vmatpush.bf16.msra.mxu0 %v429
        %465 = vmatmul.bf16.gmra.mxu0 %v420
        %v466 = vpop.f32.mrf.mxu0
        %v467 = vadd.f32 0.0, %v466
        %v468 = vpop.f32.mrf.mxu0
        %469 = vdwg.mxu0
        %v470 = vadd.f32 %v396, %v441
        %v471 = vadd.f32 %v397, %v454
        %v472 = vadd.f32 %v398, %v467
        %v473 = vld [vmem:[%s196] sm:$0x3f]
        %s474 = scalar_lea.vmem %s1, 16
        %v475 = vld [vmem:[%s474] sm:$0xf]
        %477 = vst [vmem:[#allocation1] ss:$4 sm:$0xff] %v473
        %v478 = vld.sshfl [vmem:[#allocation1] sm:$0xff pattern:$0x73625140]
        %v480 = vld.sshfl [vmem:[#allocation1 + $0x8] sm:$0xff pattern:$0x73625140]
        %v482 = vld.sshfl [vmem:[#allocation1 + $0x10] sm:$0xff pattern:$0x73625140]
        %484 = vrot.lane.b32.xlu0 %v478, 109
        %v485 = vpop.permute.xlu0 %484
        %486 = vrot.lane.b32.xlu0 %v480, 109
        %v487 = vpop.permute.xlu0 %486
        %488 = vrot.lane.b32.xlu0 %v482, 109
        %v489 = vpop.permute.xlu0 %488
        %vm490 = vcmask 891904
        %v491 = vsel %vm490, %v485, %v487
        %v492 = vsel %vm490, %v487, %v489
        %v494 = vsel %vm220, %v475, 0
        %v497 = vsel %vm224, %v491, 0
        %v500 = vsel %vm224, %v492, 0
        %v503 = vsel %vm224, %v489, 0
        %505 = vmatpush.bf16.msra.mxu0 0
        %506 = vmatpush.bf16.msra.mxu0 0
        %507 = vmatpush.bf16.msra.mxu0 0
        %508 = vmatpush.bf16.msra.mxu0 0
        %509 = vmatpush.bf16.msra.mxu0 0
        %510 = vmatpush.bf16.msra.mxu0 0
        %511 = vmatpush.bf16.msra.mxu0 0
        %512 = vmatpush.bf16.msra.mxu0 %v497
        %513 = vmatmul.bf16.gmra.mxu0 %v494
        %v514 = vpop.f32.mrf.mxu0
        %v515 = vadd.f32 0.0, %v514
        %v516 = vpop.f32.mrf.mxu0
        %517 = vdwg.mxu0
        %518 = vmatpush.bf16.msra.mxu0 0
        %519 = vmatpush.bf16.msra.mxu0 0
        %520 = vmatpush.bf16.msra.mxu0 0
        %521 = vmatpush.bf16.msra.mxu0 0
        %522 = vmatpush.bf16.msra.mxu0 0
        %523 = vmatpush.bf16.msra.mxu0 0
        %524 = vmatpush.bf16.msra.mxu0 0
        %525 = vmatpush.bf16.msra.mxu0 %v500
        %526 = vmatmul.bf16.gmra.mxu0 %v494
        %v527 = vpop.f32.mrf.mxu0
        %v528 = vadd.f32 0.0, %v527
        %v529 = vpop.f32.mrf.mxu0
        %530 = vdwg.mxu0
        %531 = vmatpush.bf16.msra.mxu0 0
        %532 = vmatpush.bf16.msra.mxu0 0
        %533 = vmatpush.bf16.msra.mxu0 0
        %534 = vmatpush.bf16.msra.mxu0 0
        %535 = vmatpush.bf16.msra.mxu0 0
        %536 = vmatpush.bf16.msra.mxu0 0
        %537 = vmatpush.bf16.msra.mxu0 0
        %538 = vmatpush.bf16.msra.mxu0 %v503
        %539 = vmatmul.bf16.gmra.mxu0 %v494
        %v540 = vpop.f32.mrf.mxu0
        %v541 = vadd.f32 0.0, %v540
        %v542 = vpop.f32.mrf.mxu0
        %543 = vdwg.mxu0
        %v544 = vadd.f32 %v470, %v515
        %v545 = vadd.f32 %v471, %v528
        %v546 = vadd.f32 %v472, %v541
        %v547 = vld [vmem:[%s196] sm:$0x3f]
        %s548 = scalar_lea.vmem %s1, 20
        %v549 = vld [vmem:[%s548] sm:$0xf]
        %551 = vst [vmem:[#allocation1] ss:$4 sm:$0xff] %v547
        %v552 = vld.sshfl [vmem:[#allocation1] sm:$0xff pattern:$0x73625140]
        %v554 = vld.sshfl [vmem:[#allocation1 + $0x8] sm:$0xff pattern:$0x73625140]
        %v556 = vld.sshfl [vmem:[#allocation1 + $0x10] sm:$0xff pattern:$0x73625140]
        %558 = vrot.lane.b32.xlu0 %v552, 108
        %v559 = vpop.permute.xlu0 %558
        %560 = vrot.lane.b32.xlu0 %v554, 108
        %v561 = vpop.permute.xlu0 %560
        %562 = vrot.lane.b32.xlu0 %v556, 108
        %v563 = vpop.permute.xlu0 %562
        %vm564 = vcmask 883712
        %v565 = vsel %vm564, %v559, %v561
        %v566 = vsel %vm564, %v561, %v563
        %v568 = vsel %vm220, %v549, 0
        %v571 = vsel %vm224, %v565, 0
        %v574 = vsel %vm224, %v566, 0
        %v577 = vsel %vm224, %v563, 0
        %579 = vmatpush.bf16.msra.mxu0 0
        %580 = vmatpush.bf16.msra.mxu0 0
        %581 = vmatpush.bf16.msra.mxu0 0
        %582 = vmatpush.bf16.msra.mxu0 0
        %583 = vmatpush.bf16.msra.mxu0 0
        %584 = vmatpush.bf16.msra.mxu0 0
        %585 = vmatpush.bf16.msra.mxu0 0
        %586 = vmatpush.bf16.msra.mxu0 %v571
        %587 = vmatmul.bf16.gmra.mxu0 %v568
        %v588 = vpop.f32.mrf.mxu0
        %v589 = vadd.f32 0.0, %v588
        %v590 = vpop.f32.mrf.mxu0
        %591 = vdwg.mxu0
        %592 = vmatpush.bf16.msra.mxu0 0
        %593 = vmatpush.bf16.msra.mxu0 0
        %594 = vmatpush.bf16.msra.mxu0 0
        %595 = vmatpush.bf16.msra.mxu0 0
        %596 = vmatpush.bf16.msra.mxu0 0
        %597 = vmatpush.bf16.msra.mxu0 0
        %598 = vmatpush.bf16.msra.mxu0 0
        %599 = vmatpush.bf16.msra.mxu0 %v574
        %600 = vmatmul.bf16.gmra.mxu0 %v568
        %v601 = vpop.f32.mrf.mxu0
        %v602 = vadd.f32 0.0, %v601
        %v603 = vpop.f32.mrf.mxu0
        %604 = vdwg.mxu0
        %605 = vmatpush.bf16.msra.mxu0 0
        %606 = vmatpush.bf16.msra.mxu0 0
        %607 = vmatpush.bf16.msra.mxu0 0
        %608 = vmatpush.bf16.msra.mxu0 0
        %609 = vmatpush.bf16.msra.mxu0 0
        %610 = vmatpush.bf16.msra.mxu0 0
        %611 = vmatpush.bf16.msra.mxu0 0
        %612 = vmatpush.bf16.msra.mxu0 %v577
        %613 = vmatmul.bf16.gmra.mxu0 %v568
        %v614 = vpop.f32.mrf.mxu0
        %v615 = vadd.f32 0.0, %v614
        %v616 = vpop.f32.mrf.mxu0
        %617 = vdwg.mxu0
        %v618 = vadd.f32 %v544, %v589
        %v619 = vadd.f32 %v545, %v602
        %v620 = vadd.f32 %v546, %v615
        %v621 = vld [vmem:[%s196] sm:$0x3f]
        %s622 = scalar_lea.vmem %s1, 24
        %v623 = vld [vmem:[%s622] sm:$0xf]
        %625 = vst [vmem:[#allocation1] ss:$4 sm:$0xff] %v621
        %v626 = vld.sshfl [vmem:[#allocation1] sm:$0xff pattern:$0x73625140]
        %v628 = vld.sshfl [vmem:[#allocation1 + $0x8] sm:$0xff pattern:$0x73625140]
        %v630 = vld.sshfl [vmem:[#allocation1 + $0x10] sm:$0xff pattern:$0x73625140]
        %632 = vrot.lane.b32.xlu0 %v626, 92
        %v633 = vpop.permute.xlu0 %632
        %634 = vrot.lane.b32.xlu0 %v628, 92
        %v635 = vpop.permute.xlu0 %634
        %636 = vrot.lane.b32.xlu0 %v630, 92
        %v637 = vpop.permute.xlu0 %636
        %vm638 = vcmask 752640
        %v639 = vsel %vm638, %v633, %v635
        %v640 = vsel %vm638, %v635, %v637
        %v642 = vsel %vm220, %v623, 0
        %v645 = vsel %vm224, %v639, 0
        %v648 = vsel %vm224, %v640, 0
        %v651 = vsel %vm224, %v637, 0
        %653 = vmatpush.bf16.msra.mxu0 0
        %654 = vmatpush.bf16.msra.mxu0 0
        %655 = vmatpush.bf16.msra.mxu0 0
        %656 = vmatpush.bf16.msra.mxu0 0
        %657 = vmatpush.bf16.msra.mxu0 0
        %658 = vmatpush.bf16.msra.mxu0 0
        %659 = vmatpush.bf16.msra.mxu0 0
        %660 = vmatpush.bf16.msra.mxu0 %v645
        %661 = vmatmul.bf16.gmra.mxu0 %v642
        %v662 = vpop.f32.mrf.mxu0
        %v663 = vadd.f32 0.0, %v662
        %v664 = vpop.f32.mrf.mxu0
        %665 = vdwg.mxu0
        %666 = vmatpush.bf16.msra.mxu0 0
        %667 = vmatpush.bf16.msra.mxu0 0
        %668 = vmatpush.bf16.msra.mxu0 0
        %669 = vmatpush.bf16.msra.mxu0 0
        %670 = vmatpush.bf16.msra.mxu0 0
        %671 = vmatpush.bf16.msra.mxu0 0
        %672 = vmatpush.bf16.msra.mxu0 0
        %673 = vmatpush.bf16.msra.mxu0 %v648
        %674 = vmatmul.bf16.gmra.mxu0 %v642
        %v675 = vpop.f32.mrf.mxu0
        %v676 = vadd.f32 0.0, %v675
        %v677 = vpop.f32.mrf.mxu0
        %678 = vdwg.mxu0
        %679 = vmatpush.bf16.msra.mxu0 0
        %680 = vmatpush.bf16.msra.mxu0 0
        %681 = vmatpush.bf16.msra.mxu0 0
        %682 = vmatpush.bf16.msra.mxu0 0
        %683 = vmatpush.bf16.msra.mxu0 0
        %684 = vmatpush.bf16.msra.mxu0 0
        %685 = vmatpush.bf16.msra.mxu0 0
        %686 = vmatpush.bf16.msra.mxu0 %v651
        %687 = vmatmul.bf16.gmra.mxu0 %v642
        %v688 = vpop.f32.mrf.mxu0
        %v689 = vadd.f32 0.0, %v688
        %v690 = vpop.f32.mrf.mxu0
        %691 = vdwg.mxu0
        %v692 = vadd.f32 %v618, %v663
        %v693 = vadd.f32 %v619, %v676
        %v694 = vadd.f32 %v620, %v689
        %v695 = vld [vmem:[%s196] sm:$0x3f]
        %s696 = scalar_lea.vmem %s1, 28
        %v697 = vld [vmem:[%s696] sm:$0xf]
        %699 = vst [vmem:[#allocation1] ss:$4 sm:$0xff] %v695
        %v700 = vld.sshfl [vmem:[#allocation1] sm:$0xff pattern:$0x73625140]
        %v702 = vld.sshfl [vmem:[#allocation1 + $0x8] sm:$0xff pattern:$0x73625140]
        %v704 = vld.sshfl [vmem:[#allocation1 + $0x10] sm:$0xff pattern:$0x73625140]
        %706 = vrot.lane.b32.xlu0 %v700, 91
        %v707 = vpop.permute.xlu0 %706
        %708 = vrot.lane.b32.xlu0 %v702, 91
        %v709 = vpop.permute.xlu0 %708
        %710 = vrot.lane.b32.xlu0 %v704, 91
        %v711 = vpop.permute.xlu0 %710
        %vm712 = vcmask 744448
        %v713 = vsel %vm712, %v707, %v709
        %v714 = vsel %vm712, %v709, %v711
        %v716 = vsel %vm220, %v697, 0
        %v719 = vsel %vm224, %v713, 0
        %v722 = vsel %vm224, %v714, 0
        %v725 = vsel %vm224, %v711, 0
        %727 = vmatpush.bf16.msra.mxu0 0
        %728 = vmatpush.bf16.msra.mxu0 0
        %729 = vmatpush.bf16.msra.mxu0 0
        %730 = vmatpush.bf16.msra.mxu0 0
        %731 = vmatpush.bf16.msra.mxu0 0
        %732 = vmatpush.bf16.msra.mxu0 0
        %733 = vmatpush.bf16.msra.mxu0 0
        %734 = vmatpush.bf16.msra.mxu0 %v719
        %735 = vmatmul.bf16.gmra.mxu0 %v716
        %v736 = vpop.f32.mrf.mxu0
        %v737 = vadd.f32 0.0, %v736
        %v738 = vpop.f32.mrf.mxu0
        %739 = vdwg.mxu0
        %740 = vmatpush.bf16.msra.mxu0 0
        %741 = vmatpush.bf16.msra.mxu0 0
        %742 = vmatpush.bf16.msra.mxu0 0
        %743 = vmatpush.bf16.msra.mxu0 0
        %744 = vmatpush.bf16.msra.mxu0 0
        %745 = vmatpush.bf16.msra.mxu0 0
        %746 = vmatpush.bf16.msra.mxu0 0
        %747 = vmatpush.bf16.msra.mxu0 %v722
        %748 = vmatmul.bf16.gmra.mxu0 %v716
        %v749 = vpop.f32.mrf.mxu0
        %v750 = vadd.f32 0.0, %v749
        %v751 = vpop.f32.mrf.mxu0
        %752 = vdwg.mxu0
        %753 = vmatpush.bf16.msra.mxu0 0
        %754 = vmatpush.bf16.msra.mxu0 0
        %755 = vmatpush.bf16.msra.mxu0 0
        %756 = vmatpush.bf16.msra.mxu0 0
        %757 = vmatpush.bf16.msra.mxu0 0
        %758 = vmatpush.bf16.msra.mxu0 0
        %759 = vmatpush.bf16.msra.mxu0 0
        %760 = vmatpush.bf16.msra.mxu0 %v725
        %761 = vmatmul.bf16.gmra.mxu0 %v716
        %v762 = vpop.f32.mrf.mxu0
        %v763 = vadd.f32 0.0, %v762
        %v764 = vpop.f32.mrf.mxu0
        %765 = vdwg.mxu0
        %v766 = vadd.f32 %v692, %v737
        %v767 = vadd.f32 %v693, %v750
        %v768 = vadd.f32 %v694, %v763
        %v769 = vld [vmem:[%s196] sm:$0x3f]
        %s770 = scalar_lea.vmem %s1, 32
        %v771 = vld [vmem:[%s770] sm:$0xf]
        %773 = vst [vmem:[#allocation1] ss:$4 sm:$0xff] %v769
        %v774 = vld.sshfl [vmem:[#allocation1] sm:$0xff pattern:$0x73625140]
        %v776 = vld.sshfl [vmem:[#allocation1 + $0x8] sm:$0xff pattern:$0x73625140]
        %v778 = vld.sshfl [vmem:[#allocation1 + $0x10] sm:$0xff pattern:$0x73625140]
        %780 = vrot.lane.b32.xlu0 %v774, 90
        %v781 = vpop.permute.xlu0 %780
        %782 = vrot.lane.b32.xlu0 %v776, 90
        %v783 = vpop.permute.xlu0 %782
        %784 = vrot.lane.b32.xlu0 %v778, 90
        %v785 = vpop.permute.xlu0 %784
        %vm786 = vcmask 736256
        %v787 = vsel %vm786, %v781, %v783
        %v788 = vsel %vm786, %v783, %v785
        %v790 = vsel %vm220, %v771, 0
        %v793 = vsel %vm224, %v787, 0
        %v796 = vsel %vm224, %v788, 0
        %v799 = vsel %vm224, %v785, 0
        %801 = vmatpush.bf16.msra.mxu0 0
        %802 = vmatpush.bf16.msra.mxu0 0
        %803 = vmatpush.bf16.msra.mxu0 0
        %804 = vmatpush.bf16.msra.mxu0 0
        %805 = vmatpush.bf16.msra.mxu0 0
        %806 = vmatpush.bf16.msra.mxu0 0
        %807 = vmatpush.bf16.msra.mxu0 0
        %808 = vmatpush.bf16.msra.mxu0 %v793
        %809 = vmatmul.bf16.gmra.mxu0 %v790
        %v810 = vpop.f32.mrf.mxu0
        %v811 = vadd.f32 0.0, %v810
        %v812 = vpop.f32.mrf.mxu0
        %813 = vdwg.mxu0
        %814 = vmatpush.bf16.msra.mxu0 0
        %815 = vmatpush.bf16.msra.mxu0 0
        %816 = vmatpush.bf16.msra.mxu0 0
        %817 = vmatpush.bf16.msra.mxu0 0
        %818 = vmatpush.bf16.msra.mxu0 0
        %819 = vmatpush.bf16.msra.mxu0 0
        %820 = vmatpush.bf16.msra.mxu0 0
        %821 = vmatpush.bf16.msra.mxu0 %v796
        %822 = vmatmul.bf16.gmra.mxu0 %v790
        %v823 = vpop.f32.mrf.mxu0
        %v824 = vadd.f32 0.0, %v823
        %v825 = vpop.f32.mrf.mxu0
        %826 = vdwg.mxu0
        %827 = vmatpush.bf16.msra.mxu0 0
        %828 = vmatpush.bf16.msra.mxu0 0
        %829 = vmatpush.bf16.msra.mxu0 0
        %830 = vmatpush.bf16.msra.mxu0 0
        %831 = vmatpush.bf16.msra.mxu0 0
        %832 = vmatpush.bf16.msra.mxu0 0
        %833 = vmatpush.bf16.msra.mxu0 0
        %834 = vmatpush.bf16.msra.mxu0 %v799
        %835 = vmatmul.bf16.gmra.mxu0 %v790
        %v836 = vpop.f32.mrf.mxu0
        %v837 = vadd.f32 0.0, %v836
        %v838 = vpop.f32.mrf.mxu0
        %839 = vdwg.mxu0
        %v840 = vadd.f32 %v766, %v811
        %v841 = vadd.f32 %v767, %v824
        %v842 = vadd.f32 %v768, %v837
        %v843 = vld [vmem:[%s2] sm:$0xff]
        %845 = vset.pattern.permute.xlu0 0
        %846 = vperm.xlu0 %845, %v843
        %v847 = vpop.permute.xlu0 %846
        %v849 = vadd.f32 %v840, %v847
        %v850 = vadd.f32 %v841, %v847
        %v851 = vadd.f32 %v842, %v847
        %v853 = vrot.slane %v849, 1
        %v854 = vrot.slane %v849, 2
        %v855 = vrot.slane %v849, 3
        %v856 = vrot.slane %v849, 4
        %v857 = vrot.slane %v849, 5
        %v858 = vrot.slane %v849, 6
        %v859 = vrot.slane %v849, 7
        %vm867 = vcmask 122880
        %868 = vst.msk [vmem:[%s187] sm:$0x1] %vm867, %v849
        %869 = vst.msk [vmem:[%s187 + $0x10] sm:$0x1] %vm867, %v853
        %870 = vst.msk [vmem:[%s187 + $0x20] sm:$0x1] %vm867, %v854
        %871 = vst.msk [vmem:[%s187 + $0x30] sm:$0x1] %vm867, %v855
        %872 = vst.msk [vmem:[%s187 + $0x40] sm:$0x1] %vm867, %v856
        %873 = vst.msk [vmem:[%s187 + $0x50] sm:$0x1] %vm867, %v857
        %874 = vst.msk [vmem:[%s187 + $0x60] sm:$0x1] %vm867, %v858
        %875 = vst.msk [vmem:[%s187 + $0x70] sm:$0x1] %vm867, %v859
        %v876 = vperm.slane %v849, 0
        %v877 = vperm.slane %v853, 0
        %v878 = vperm.slane %v854, 0
        %v879 = vperm.slane %v855, 0
        %v880 = vperm.slane %v856, 0
        %v881 = vperm.slane %v857, 0
        %v882 = vperm.slane %v858, 0
        %v883 = vperm.slane %v859, 0
        %884 = vrot.lane.b32.xlu0 %v876, 110
        %v885 = vpop.permute.xlu0 %884
        %886 = vrot.lane.b32.xlu0 %v877, 110
        %v887 = vpop.permute.xlu0 %886
        %888 = vrot.lane.b32.xlu0 %v878, 110
        %v889 = vpop.permute.xlu0 %888
        %890 = vrot.lane.b32.xlu0 %v879, 110
        %v891 = vpop.permute.xlu0 %890
        %892 = vrot.lane.b32.xlu0 %v880, 110
        %v893 = vpop.permute.xlu0 %892
        %894 = vrot.lane.b32.xlu0 %v881, 110
        %v895 = vpop.permute.xlu0 %894
        %896 = vrot.lane.b32.xlu0 %v882, 110
        %v897 = vpop.permute.xlu0 %896
        %898 = vrot.lane.b32.xlu0 %v883, 110
        %v899 = vpop.permute.xlu0 %898
        %908 = vst.msk [vmem:[%s187 + $0x1] sm:$0x1] %vm867, %v885
        %909 = vst.msk [vmem:[%s187 + $0x11] sm:$0x1] %vm867, %v887
        %910 = vst.msk [vmem:[%s187 + $0x21] sm:$0x1] %vm867, %v889
        %911 = vst.msk [vmem:[%s187 + $0x31] sm:$0x1] %vm867, %v891
        %912 = vst.msk [vmem:[%s187 + $0x41] sm:$0x1] %vm867, %v893
        %913 = vst.msk [vmem:[%s187 + $0x51] sm:$0x1] %vm867, %v895
        %914 = vst.msk [vmem:[%s187 + $0x61] sm:$0x1] %vm867, %v897
        %915 = vst.msk [vmem:[%s187 + $0x71] sm:$0x1] %vm867, %v899
        %916 = vrot.lane.b32.xlu0 %v876, 92
        %v917 = vpop.permute.xlu0 %916
        %918 = vrot.lane.b32.xlu0 %v877, 92
        %v919 = vpop.permute.xlu0 %918
        %920 = vrot.lane.b32.xlu0 %v878, 92
        %v921 = vpop.permute.xlu0 %920
        %922 = vrot.lane.b32.xlu0 %v879, 92
        %v923 = vpop.permute.xlu0 %922
        %924 = vrot.lane.b32.xlu0 %v880, 92
        %v925 = vpop.permute.xlu0 %924
        %926 = vrot.lane.b32.xlu0 %v881, 92
        %v927 = vpop.permute.xlu0 %926
        %928 = vrot.lane.b32.xlu0 %v882, 92
        %v929 = vpop.permute.xlu0 %928
        %930 = vrot.lane.b32.xlu0 %v883, 92
        %v931 = vpop.permute.xlu0 %930
        %940 = vst.msk [vmem:[%s187 + $0x2] sm:$0x1] %vm867, %v917
        %941 = vst.msk [vmem:[%s187 + $0x12] sm:$0x1] %vm867, %v919
        %942 = vst.msk [vmem:[%s187 + $0x22] sm:$0x1] %vm867, %v921
        %943 = vst.msk [vmem:[%s187 + $0x32] sm:$0x1] %vm867, %v923
        %944 = vst.msk [vmem:[%s187 + $0x42] sm:$0x1] %vm867, %v925
        %945 = vst.msk [vmem:[%s187 + $0x52] sm:$0x1] %vm867, %v927
        %946 = vst.msk [vmem:[%s187 + $0x62] sm:$0x1] %vm867, %v929
        %947 = vst.msk [vmem:[%s187 + $0x72] sm:$0x1] %vm867, %v931
        %948 = vrot.lane.b32.xlu0 %v876, 74
        %v949 = vpop.permute.xlu0 %948
        %950 = vrot.lane.b32.xlu0 %v877, 74
        %v951 = vpop.permute.xlu0 %950
        %952 = vrot.lane.b32.xlu0 %v878, 74
        %v953 = vpop.permute.xlu0 %952
        %954 = vrot.lane.b32.xlu0 %v879, 74
        %v955 = vpop.permute.xlu0 %954
        %956 = vrot.lane.b32.xlu0 %v880, 74
        %v957 = vpop.permute.xlu0 %956
        %958 = vrot.lane.b32.xlu0 %v881, 74
        %v959 = vpop.permute.xlu0 %958
        %960 = vrot.lane.b32.xlu0 %v882, 74
        %v961 = vpop.permute.xlu0 %960
        %962 = vrot.lane.b32.xlu0 %v883, 74
        %v963 = vpop.permute.xlu0 %962
        %972 = vst.msk [vmem:[%s187 + $0x3] sm:$0x1] %vm867, %v949
        %973 = vst.msk [vmem:[%s187 + $0x13] sm:$0x1] %vm867, %v951
        %974 = vst.msk [vmem:[%s187 + $0x23] sm:$0x1] %vm867, %v953
        %975 = vst.msk [vmem:[%s187 + $0x33] sm:$0x1] %vm867, %v955
        %976 = vst.msk [vmem:[%s187 + $0x43] sm:$0x1] %vm867, %v957
        %977 = vst.msk [vmem:[%s187 + $0x53] sm:$0x1] %vm867, %v959
        %978 = vst.msk [vmem:[%s187 + $0x63] sm:$0x1] %vm867, %v961
        %979 = vst.msk [vmem:[%s187 + $0x73] sm:$0x1] %vm867, %v963
        %980 = vrot.lane.b32.xlu0 %v876, 56
        %v981 = vpop.permute.xlu0 %980
        %982 = vrot.lane.b32.xlu0 %v877, 56
        %v983 = vpop.permute.xlu0 %982
        %984 = vrot.lane.b32.xlu0 %v878, 56
        %v985 = vpop.permute.xlu0 %984
        %986 = vrot.lane.b32.xlu0 %v879, 56
        %v987 = vpop.permute.xlu0 %986
        %988 = vrot.lane.b32.xlu0 %v880, 56
        %v989 = vpop.permute.xlu0 %988
        %990 = vrot.lane.b32.xlu0 %v881, 56
        %v991 = vpop.permute.xlu0 %990
        %992 = vrot.lane.b32.xlu0 %v882, 56
        %v993 = vpop.permute.xlu0 %992
        %994 = vrot.lane.b32.xlu0 %v883, 56
        %v995 = vpop.permute.xlu0 %994
        %1004 = vst.msk [vmem:[%s187 + $0x4] sm:$0x1] %vm867, %v981
        %1005 = vst.msk [vmem:[%s187 + $0x14] sm:$0x1] %vm867, %v983
        %1006 = vst.msk [vmem:[%s187 + $0x24] sm:$0x1] %vm867, %v985
        %1007 = vst.msk [vmem:[%s187 + $0x34] sm:$0x1] %vm867, %v987
        %1008 = vst.msk [vmem:[%s187 + $0x44] sm:$0x1] %vm867, %v989
        %1009 = vst.msk [vmem:[%s187 + $0x54] sm:$0x1] %vm867, %v991
        %1010 = vst.msk [vmem:[%s187 + $0x64] sm:$0x1] %vm867, %v993
        %1011 = vst.msk [vmem:[%s187 + $0x74] sm:$0x1] %vm867, %v995
        %1012 = vrot.lane.b32.xlu0 %v876, 38
        %v1013 = vpop.permute.xlu0 %1012
        %1014 = vrot.lane.b32.xlu0 %v877, 38
        %v1015 = vpop.permute.xlu0 %1014
        %1016 = vrot.lane.b32.xlu0 %v878, 38
        %v1017 = vpop.permute.xlu0 %1016
        %1018 = vrot.lane.b32.xlu0 %v879, 38
        %v1019 = vpop.permute.xlu0 %1018
        %1020 = vrot.lane.b32.xlu0 %v880, 38
        %v1021 = vpop.permute.xlu0 %1020
        %1022 = vrot.lane.b32.xlu0 %v881, 38
        %v1023 = vpop.permute.xlu0 %1022
        %1024 = vrot.lane.b32.xlu0 %v882, 38
        %v1025 = vpop.permute.xlu0 %1024
        %1026 = vrot.lane.b32.xlu0 %v883, 38
        %v1027 = vpop.permute.xlu0 %1026
        %1036 = vst.msk [vmem:[%s187 + $0x5] sm:$0x1] %vm867, %v1013
        %1037 = vst.msk [vmem:[%s187 + $0x15] sm:$0x1] %vm867, %v1015
        %1038 = vst.msk [vmem:[%s187 + $0x25] sm:$0x1] %vm867, %v1017
        %1039 = vst.msk [vmem:[%s187 + $0x35] sm:$0x1] %vm867, %v1019
        %1040 = vst.msk [vmem:[%s187 + $0x45] sm:$0x1] %vm867, %v1021
        %1041 = vst.msk [vmem:[%s187 + $0x55] sm:$0x1] %vm867, %v1023
        %1042 = vst.msk [vmem:[%s187 + $0x65] sm:$0x1] %vm867, %v1025
        %1043 = vst.msk [vmem:[%s187 + $0x75] sm:$0x1] %vm867, %v1027
        %1044 = vrot.lane.b32.xlu0 %v876, 20
        %v1045 = vpop.permute.xlu0 %1044
        %1046 = vrot.lane.b32.xlu0 %v877, 20
        %v1047 = vpop.permute.xlu0 %1046
        %1048 = vrot.lane.b32.xlu0 %v878, 20
        %v1049 = vpop.permute.xlu0 %1048
        %1050 = vrot.lane.b32.xlu0 %v879, 20
        %v1051 = vpop.permute.xlu0 %1050
        %1052 = vrot.lane.b32.xlu0 %v880, 20
        %v1053 = vpop.permute.xlu0 %1052
        %1054 = vrot.lane.b32.xlu0 %v881, 20
        %v1055 = vpop.permute.xlu0 %1054
        %1056 = vrot.lane.b32.xlu0 %v882, 20
        %v1057 = vpop.permute.xlu0 %1056
        %1058 = vrot.lane.b32.xlu0 %v883, 20
        %v1059 = vpop.permute.xlu0 %1058
        %1068 = vst.msk [vmem:[%s187 + $0x6] sm:$0x1] %vm867, %v1045
        %1069 = vst.msk [vmem:[%s187 + $0x16] sm:$0x1] %vm867, %v1047
        %1070 = vst.msk [vmem:[%s187 + $0x26] sm:$0x1] %vm867, %v1049
        %1071 = vst.msk [vmem:[%s187 + $0x36] sm:$0x1] %vm867, %v1051
        %1072 = vst.msk [vmem:[%s187 + $0x46] sm:$0x1] %vm867, %v1053
        %1073 = vst.msk [vmem:[%s187 + $0x56] sm:$0x1] %vm867, %v1055
        %1074 = vst.msk [vmem:[%s187 + $0x66] sm:$0x1] %vm867, %v1057
        %1075 = vst.msk [vmem:[%s187 + $0x76] sm:$0x1] %vm867, %v1059
        %v1077 = vrot.slane %v850, 7
        %vm1078 = vcmask 1040384
        %v1079 = vsel %vm1078, %v849, %v1077
        %vm1080 = vcmask 1041409
        %v1081 = vsel %vm1080, %v849, %v1077
        %v1082 = vrot.slane %v1081, 1
        %vm1083 = vcmask 1042434
        %v1084 = vsel %vm1083, %v849, %v1077
        %v1085 = vrot.slane %v1084, 2
        %vm1086 = vcmask 1043459
        %v1087 = vsel %vm1086, %v849, %v1077
        %v1088 = vrot.slane %v1087, 3
        %vm1089 = vcmask 1044484
        %v1090 = vsel %vm1089, %v849, %v1077
        %v1091 = vrot.slane %v1090, 4
        %vm1092 = vcmask 1045509
        %v1093 = vsel %vm1092, %v849, %v1077
        %v1094 = vrot.slane %v1093, 5
        %vm1095 = vcmask 1046534
        %v1096 = vsel %vm1095, %v849, %v1077
        %v1097 = vrot.slane %v1096, 6
        %vm1098 = vcmask 1046528
        %v1099 = vsel %vm1098, %v1077, %v849
        %v1100 = vrot.slane %v1099, 7
        %v1101 = vperm.slane %v1079, 0
        %v1102 = vperm.slane %v1079, 1
        %v1103 = vperm.slane %v1082, 0
        %v1104 = vperm.slane %v1082, 1
        %v1105 = vperm.slane %v1085, 0
        %v1106 = vperm.slane %v1085, 1
        %v1107 = vperm.slane %v1088, 0
        %v1108 = vperm.slane %v1088, 1
        %v1109 = vperm.slane %v1091, 0
        %v1110 = vperm.slane %v1091, 1
        %v1111 = vperm.slane %v1094, 0
        %v1112 = vperm.slane %v1094, 1
        %v1113 = vperm.slane %v1097, 0
        %v1114 = vperm.slane %v1097, 1
        %v1115 = vperm.slane %v1100, 0
        %v1116 = vperm.slane %v1100, 1
        %1117 = vrot.lane.b32.xlu0 %v1101, 2
        %v1118 = vpop.permute.xlu0 %1117
        %1119 = vrot.lane.b32.xlu0 %v1102, 2
        %v1120 = vpop.permute.xlu0 %1119
        %1121 = vrot.lane.b32.xlu0 %v1103, 2
        %v1122 = vpop.permute.xlu0 %1121
        %1123 = vrot.lane.b32.xlu0 %v1104, 2
        %v1124 = vpop.permute.xlu0 %1123
        %1125 = vrot.lane.b32.xlu0 %v1105, 2
        %v1126 = vpop.permute.xlu0 %1125
        %1127 = vrot.lane.b32.xlu0 %v1106, 2
        %v1128 = vpop.permute.xlu0 %1127
        %1129 = vrot.lane.b32.xlu0 %v1107, 2
        %v1130 = vpop.permute.xlu0 %1129
        %1131 = vrot.lane.b32.xlu0 %v1108, 2
        %v1132 = vpop.permute.xlu0 %1131
        %1133 = vrot.lane.b32.xlu0 %v1109, 2
        %v1134 = vpop.permute.xlu0 %1133
        %1135 = vrot.lane.b32.xlu0 %v1110, 2
        %v1136 = vpop.permute.xlu0 %1135
        %1137 = vrot.lane.b32.xlu0 %v1111, 2
        %v1138 = vpop.permute.xlu0 %1137
        %1139 = vrot.lane.b32.xlu0 %v1112, 2
        %v1140 = vpop.permute.xlu0 %1139
        %1141 = vrot.lane.b32.xlu0 %v1113, 2
        %v1142 = vpop.permute.xlu0 %1141
        %1143 = vrot.lane.b32.xlu0 %v1114, 2
        %v1144 = vpop.permute.xlu0 %1143
        %1145 = vrot.lane.b32.xlu0 %v1115, 2
        %v1146 = vpop.permute.xlu0 %1145
        %1147 = vrot.lane.b32.xlu0 %v1116, 2
        %v1148 = vpop.permute.xlu0 %1147
        %vm1149 = vcmask 15360
        %v1150 = vsel %vm1149, %v1118, %v1120
        %v1151 = vsel %vm1149, %v1122, %v1124
        %v1152 = vsel %vm1149, %v1126, %v1128
        %v1153 = vsel %vm1149, %v1130, %v1132
        %v1154 = vsel %vm1149, %v1134, %v1136
        %v1155 = vsel %vm1149, %v1138, %v1140
        %v1156 = vsel %vm1149, %v1142, %v1144
        %v1157 = vsel %vm1149, %v1146, %v1148
        %1166 = vst.msk [vmem:[%s187 + $0x7] sm:$0x1] %vm867, %v1150
        %1167 = vst.msk [vmem:[%s187 + $0x17] sm:$0x1] %vm867, %v1151
        %1168 = vst.msk [vmem:[%s187 + $0x27] sm:$0x1] %vm867, %v1152
        %1169 = vst.msk [vmem:[%s187 + $0x37] sm:$0x1] %vm867, %v1153
        %1170 = vst.msk [vmem:[%s187 + $0x47] sm:$0x1] %vm867, %v1154
        %1171 = vst.msk [vmem:[%s187 + $0x57] sm:$0x1] %vm867, %v1155
        %1172 = vst.msk [vmem:[%s187 + $0x67] sm:$0x1] %vm867, %v1156
        %1173 = vst.msk [vmem:[%s187 + $0x77] sm:$0x1] %vm867, %v1157
        %v1174 = vrot.slane %v850, 1
        %v1175 = vrot.slane %v850, 2
        %v1176 = vrot.slane %v850, 3
        %v1177 = vrot.slane %v850, 4
        %v1178 = vrot.slane %v850, 5
        %v1179 = vrot.slane %v850, 6
        %v1180 = vperm.slane %v850, 0
        %v1181 = vperm.slane %v1174, 0
        %v1182 = vperm.slane %v1175, 0
        %v1183 = vperm.slane %v1176, 0
        %v1184 = vperm.slane %v1177, 0
        %v1185 = vperm.slane %v1178, 0
        %v1186 = vperm.slane %v1179, 0
        %v1187 = vperm.slane %v1077, 0
        %1188 = vrot.lane.b32.xlu0 %v1180, 112
        %v1189 = vpop.permute.xlu0 %1188
        %1190 = vrot.lane.b32.xlu0 %v1181, 112
        %v1191 = vpop.permute.xlu0 %1190
        %1192 = vrot.lane.b32.xlu0 %v1182, 112
        %v1193 = vpop.permute.xlu0 %1192
        %1194 = vrot.lane.b32.xlu0 %v1183, 112
        %v1195 = vpop.permute.xlu0 %1194
        %1196 = vrot.lane.b32.xlu0 %v1184, 112
        %v1197 = vpop.permute.xlu0 %1196
        %1198 = vrot.lane.b32.xlu0 %v1185, 112
        %v1199 = vpop.permute.xlu0 %1198
        %1200 = vrot.lane.b32.xlu0 %v1186, 112
        %v1201 = vpop.permute.xlu0 %1200
        %1202 = vrot.lane.b32.xlu0 %v1187, 112
        %v1203 = vpop.permute.xlu0 %1202
        %1212 = vst.msk [vmem:[%s187 + $0x8] sm:$0x1] %vm867, %v1189
        %1213 = vst.msk [vmem:[%s187 + $0x18] sm:$0x1] %vm867, %v1191
        %1214 = vst.msk [vmem:[%s187 + $0x28] sm:$0x1] %vm867, %v1193
        %1215 = vst.msk [vmem:[%s187 + $0x38] sm:$0x1] %vm867, %v1195
        %1216 = vst.msk [vmem:[%s187 + $0x48] sm:$0x1] %vm867, %v1197
        %1217 = vst.msk [vmem:[%s187 + $0x58] sm:$0x1] %vm867, %v1199
        %1218 = vst.msk [vmem:[%s187 + $0x68] sm:$0x1] %vm867, %v1201
        %1219 = vst.msk [vmem:[%s187 + $0x78] sm:$0x1] %vm867, %v1203
        %1220 = vrot.lane.b32.xlu0 %v1180, 94
        %v1221 = vpop.permute.xlu0 %1220
        %1222 = vrot.lane.b32.xlu0 %v1181, 94
        %v1223 = vpop.permute.xlu0 %1222
        %1224 = vrot.lane.b32.xlu0 %v1182, 94
        %v1225 = vpop.permute.xlu0 %1224
        %1226 = vrot.lane.b32.xlu0 %v1183, 94
        %v1227 = vpop.permute.xlu0 %1226
        %1228 = vrot.lane.b32.xlu0 %v1184, 94
        %v1229 = vpop.permute.xlu0 %1228
        %1230 = vrot.lane.b32.xlu0 %v1185, 94
        %v1231 = vpop.permute.xlu0 %1230
        %1232 = vrot.lane.b32.xlu0 %v1186, 94
        %v1233 = vpop.permute.xlu0 %1232
        %1234 = vrot.lane.b32.xlu0 %v1187, 94
        %v1235 = vpop.permute.xlu0 %1234
        %1244 = vst.msk [vmem:[%s187 + $0x9] sm:$0x1] %vm867, %v1221
        %1245 = vst.msk [vmem:[%s187 + $0x19] sm:$0x1] %vm867, %v1223
        %1246 = vst.msk [vmem:[%s187 + $0x29] sm:$0x1] %vm867, %v1225
        %1247 = vst.msk [vmem:[%s187 + $0x39] sm:$0x1] %vm867, %v1227
        %1248 = vst.msk [vmem:[%s187 + $0x49] sm:$0x1] %vm867, %v1229
        %1249 = vst.msk [vmem:[%s187 + $0x59] sm:$0x1] %vm867, %v1231
        %1250 = vst.msk [vmem:[%s187 + $0x69] sm:$0x1] %vm867, %v1233
        %1251 = vst.msk [vmem:[%s187 + $0x79] sm:$0x1] %vm867, %v1235
        %1252 = vrot.lane.b32.xlu0 %v1180, 76
        %v1253 = vpop.permute.xlu0 %1252
        %1254 = vrot.lane.b32.xlu0 %v1181, 76
        %v1255 = vpop.permute.xlu0 %1254
        %1256 = vrot.lane.b32.xlu0 %v1182, 76
        %v1257 = vpop.permute.xlu0 %1256
        %1258 = vrot.lane.b32.xlu0 %v1183, 76
        %v1259 = vpop.permute.xlu0 %1258
        %1260 = vrot.lane.b32.xlu0 %v1184, 76
        %v1261 = vpop.permute.xlu0 %1260
        %1262 = vrot.lane.b32.xlu0 %v1185, 76
        %v1263 = vpop.permute.xlu0 %1262
        %1264 = vrot.lane.b32.xlu0 %v1186, 76
        %v1265 = vpop.permute.xlu0 %1264
        %1266 = vrot.lane.b32.xlu0 %v1187, 76
        %v1267 = vpop.permute.xlu0 %1266
        %1276 = vst.msk [vmem:[%s187 + $0xa] sm:$0x1] %vm867, %v1253
        %1277 = vst.msk [vmem:[%s187 + $0x1a] sm:$0x1] %vm867, %v1255
        %1278 = vst.msk [vmem:[%s187 + $0x2a] sm:$0x1] %vm867, %v1257
        %1279 = vst.msk [vmem:[%s187 + $0x3a] sm:$0x1] %vm867, %v1259
        %1280 = vst.msk [vmem:[%s187 + $0x4a] sm:$0x1] %vm867, %v1261
        %1281 = vst.msk [vmem:[%s187 + $0x5a] sm:$0x1] %vm867, %v1263
        %1282 = vst.msk [vmem:[%s187 + $0x6a] sm:$0x1] %vm867, %v1265
        %1283 = vst.msk [vmem:[%s187 + $0x7a] sm:$0x1] %vm867, %v1267
        %1284 = vrot.lane.b32.xlu0 %v1180, 58
        %v1285 = vpop.permute.xlu0 %1284
        %1286 = vrot.lane.b32.xlu0 %v1181, 58
        %v1287 = vpop.permute.xlu0 %1286
        %1288 = vrot.lane.b32.xlu0 %v1182, 58
        %v1289 = vpop.permute.xlu0 %1288
        %1290 = vrot.lane.b32.xlu0 %v1183, 58
        %v1291 = vpop.permute.xlu0 %1290
        %1292 = vrot.lane.b32.xlu0 %v1184, 58
        %v1293 = vpop.permute.xlu0 %1292
        %1294 = vrot.lane.b32.xlu0 %v1185, 58
        %v1295 = vpop.permute.xlu0 %1294
        %1296 = vrot.lane.b32.xlu0 %v1186, 58
        %v1297 = vpop.permute.xlu0 %1296
        %1298 = vrot.lane.b32.xlu0 %v1187, 58
        %v1299 = vpop.permute.xlu0 %1298
        %1308 = vst.msk [vmem:[%s187 + $0xb] sm:$0x1] %vm867, %v1285
        %1309 = vst.msk [vmem:[%s187 + $0x1b] sm:$0x1] %vm867, %v1287
        %1310 = vst.msk [vmem:[%s187 + $0x2b] sm:$0x1] %vm867, %v1289
        %1311 = vst.msk [vmem:[%s187 + $0x3b] sm:$0x1] %vm867, %v1291
        %1312 = vst.msk [vmem:[%s187 + $0x4b] sm:$0x1] %vm867, %v1293
        %1313 = vst.msk [vmem:[%s187 + $0x5b] sm:$0x1] %vm867, %v1295
        %1314 = vst.msk [vmem:[%s187 + $0x6b] sm:$0x1] %vm867, %v1297
        %1315 = vst.msk [vmem:[%s187 + $0x7b] sm:$0x1] %vm867, %v1299
        %1316 = vrot.lane.b32.xlu0 %v1180, 40
        %v1317 = vpop.permute.xlu0 %1316
        %1318 = vrot.lane.b32.xlu0 %v1181, 40
        %v1319 = vpop.permute.xlu0 %1318
        %1320 = vrot.lane.b32.xlu0 %v1182, 40
        %v1321 = vpop.permute.xlu0 %1320
        %1322 = vrot.lane.b32.xlu0 %v1183, 40
        %v1323 = vpop.permute.xlu0 %1322
        %1324 = vrot.lane.b32.xlu0 %v1184, 40
        %v1325 = vpop.permute.xlu0 %1324
        %1326 = vrot.lane.b32.xlu0 %v1185, 40
        %v1327 = vpop.permute.xlu0 %1326
        %1328 = vrot.lane.b32.xlu0 %v1186, 40
        %v1329 = vpop.permute.xlu0 %1328
        %1330 = vrot.lane.b32.xlu0 %v1187, 40
        %v1331 = vpop.permute.xlu0 %1330
        %1340 = vst.msk [vmem:[%s187 + $0xc] sm:$0x1] %vm867, %v1317
        %1341 = vst.msk [vmem:[%s187 + $0x1c] sm:$0x1] %vm867, %v1319
        %1342 = vst.msk [vmem:[%s187 + $0x2c] sm:$0x1] %vm867, %v1321
        %1343 = vst.msk [vmem:[%s187 + $0x3c] sm:$0x1] %vm867, %v1323
        %1344 = vst.msk [vmem:[%s187 + $0x4c] sm:$0x1] %vm867, %v1325
        %1345 = vst.msk [vmem:[%s187 + $0x5c] sm:$0x1] %vm867, %v1327
        %1346 = vst.msk [vmem:[%s187 + $0x6c] sm:$0x1] %vm867, %v1329
        %1347 = vst.msk [vmem:[%s187 + $0x7c] sm:$0x1] %vm867, %v1331
        %1348 = vrot.lane.b32.xlu0 %v1180, 22
        %v1349 = vpop.permute.xlu0 %1348
        %1350 = vrot.lane.b32.xlu0 %v1181, 22
        %v1351 = vpop.permute.xlu0 %1350
        %1352 = vrot.lane.b32.xlu0 %v1182, 22
        %v1353 = vpop.permute.xlu0 %1352
        %1354 = vrot.lane.b32.xlu0 %v1183, 22
        %v1355 = vpop.permute.xlu0 %1354
        %1356 = vrot.lane.b32.xlu0 %v1184, 22
        %v1357 = vpop.permute.xlu0 %1356
        %1358 = vrot.lane.b32.xlu0 %v1185, 22
        %v1359 = vpop.permute.xlu0 %1358
        %1360 = vrot.lane.b32.xlu0 %v1186, 22
        %v1361 = vpop.permute.xlu0 %1360
        %1362 = vrot.lane.b32.xlu0 %v1187, 22
        %v1363 = vpop.permute.xlu0 %1362
        %1372 = vst.msk [vmem:[%s187 + $0xd] sm:$0x1] %vm867, %v1349
        %1373 = vst.msk [vmem:[%s187 + $0x1d] sm:$0x1] %vm867, %v1351
        %1374 = vst.msk [vmem:[%s187 + $0x2d] sm:$0x1] %vm867, %v1353
        %1375 = vst.msk [vmem:[%s187 + $0x3d] sm:$0x1] %vm867, %v1355
        %1376 = vst.msk [vmem:[%s187 + $0x4d] sm:$0x1] %vm867, %v1357
        %1377 = vst.msk [vmem:[%s187 + $0x5d] sm:$0x1] %vm867, %v1359
        %1378 = vst.msk [vmem:[%s187 + $0x6d] sm:$0x1] %vm867, %v1361
        %1379 = vst.msk [vmem:[%s187 + $0x7d] sm:$0x1] %vm867, %v1363
        %v1381 = vrot.slane %v851, 7
        %v1382 = vsel %vm1078, %v850, %v1381
        %v1383 = vsel %vm1080, %v850, %v1381
        %v1384 = vrot.slane %v1383, 1
        %v1385 = vsel %vm1083, %v850, %v1381
        %v1386 = vrot.slane %v1385, 2
        %v1387 = vsel %vm1086, %v850, %v1381
        %v1388 = vrot.slane %v1387, 3
        %v1389 = vsel %vm1089, %v850, %v1381
        %v1390 = vrot.slane %v1389, 4
        %v1391 = vsel %vm1092, %v850, %v1381
        %v1392 = vrot.slane %v1391, 5
        %v1393 = vsel %vm1095, %v850, %v1381
        %v1394 = vrot.slane %v1393, 6
        %v1395 = vsel %vm1098, %v1381, %v850
        %v1396 = vrot.slane %v1395, 7
        %v1397 = vperm.slane %v1382, 0
        %v1398 = vperm.slane %v1382, 1
        %v1399 = vperm.slane %v1384, 0
        %v1400 = vperm.slane %v1384, 1
        %v1401 = vperm.slane %v1386, 0
        %v1402 = vperm.slane %v1386, 1
        %v1403 = vperm.slane %v1388, 0
        %v1404 = vperm.slane %v1388, 1
        %v1405 = vperm.slane %v1390, 0
        %v1406 = vperm.slane %v1390, 1
        %v1407 = vperm.slane %v1392, 0
        %v1408 = vperm.slane %v1392, 1
        %v1409 = vperm.slane %v1394, 0
        %v1410 = vperm.slane %v1394, 1
        %v1411 = vperm.slane %v1396, 0
        %v1412 = vperm.slane %v1396, 1
        %1413 = vrot.lane.b32.xlu0 %v1397, 4
        %v1414 = vpop.permute.xlu0 %1413
        %1415 = vrot.lane.b32.xlu0 %v1398, 4
        %v1416 = vpop.permute.xlu0 %1415
        %1417 = vrot.lane.b32.xlu0 %v1399, 4
        %v1418 = vpop.permute.xlu0 %1417
        %1419 = vrot.lane.b32.xlu0 %v1400, 4
        %v1420 = vpop.permute.xlu0 %1419
        %1421 = vrot.lane.b32.xlu0 %v1401, 4
        %v1422 = vpop.permute.xlu0 %1421
        %1423 = vrot.lane.b32.xlu0 %v1402, 4
        %v1424 = vpop.permute.xlu0 %1423
        %1425 = vrot.lane.b32.xlu0 %v1403, 4
        %v1426 = vpop.permute.xlu0 %1425
        %1427 = vrot.lane.b32.xlu0 %v1404, 4
        %v1428 = vpop.permute.xlu0 %1427
        %1429 = vrot.lane.b32.xlu0 %v1405, 4
        %v1430 = vpop.permute.xlu0 %1429
        %1431 = vrot.lane.b32.xlu0 %v1406, 4
        %v1432 = vpop.permute.xlu0 %1431
        %1433 = vrot.lane.b32.xlu0 %v1407, 4
        %v1434 = vpop.permute.xlu0 %1433
        %1435 = vrot.lane.b32.xlu0 %v1408, 4
        %v1436 = vpop.permute.xlu0 %1435
        %1437 = vrot.lane.b32.xlu0 %v1409, 4
        %v1438 = vpop.permute.xlu0 %1437
        %1439 = vrot.lane.b32.xlu0 %v1410, 4
        %v1440 = vpop.permute.xlu0 %1439
        %1441 = vrot.lane.b32.xlu0 %v1411, 4
        %v1442 = vpop.permute.xlu0 %1441
        %1443 = vrot.lane.b32.xlu0 %v1412, 4
        %v1444 = vpop.permute.xlu0 %1443
        %v1445 = vsel %vm220, %v1414, %v1416
        %v1446 = vsel %vm220, %v1418, %v1420
        %v1447 = vsel %vm220, %v1422, %v1424
        %v1448 = vsel %vm220, %v1426, %v1428
        %v1449 = vsel %vm220, %v1430, %v1432
        %v1450 = vsel %vm220, %v1434, %v1436
        %v1451 = vsel %vm220, %v1438, %v1440
        %v1452 = vsel %vm220, %v1442, %v1444
        %1461 = vst.msk [vmem:[%s187 + $0xe] sm:$0x1] %vm867, %v1445
        %1462 = vst.msk [vmem:[%s187 + $0x1e] sm:$0x1] %vm867, %v1446
        %1463 = vst.msk [vmem:[%s187 + $0x2e] sm:$0x1] %vm867, %v1447
        %1464 = vst.msk [vmem:[%s187 + $0x3e] sm:$0x1] %vm867, %v1448
        %1465 = vst.msk [vmem:[%s187 + $0x4e] sm:$0x1] %vm867, %v1449
        %1466 = vst.msk [vmem:[%s187 + $0x5e] sm:$0x1] %vm867, %v1450
        %1467 = vst.msk [vmem:[%s187 + $0x6e] sm:$0x1] %vm867, %v1451
        %1468 = vst.msk [vmem:[%s187 + $0x7e] sm:$0x1] %vm867, %v1452
        %v1469 = vrot.slane %v851, 1
        %v1470 = vrot.slane %v851, 2
        %v1471 = vrot.slane %v851, 3
        %v1472 = vrot.slane %v851, 4
        %v1473 = vrot.slane %v851, 5
        %v1474 = vrot.slane %v851, 6
        %v1475 = vperm.slane %v851, 0
        %v1476 = vperm.slane %v1469, 0
        %v1477 = vperm.slane %v1470, 0
        %v1478 = vperm.slane %v1471, 0
        %v1479 = vperm.slane %v1472, 0
        %v1480 = vperm.slane %v1473, 0
        %v1481 = vperm.slane %v1474, 0
        %v1482 = vperm.slane %v1381, 0
        %1483 = vrot.lane.b32.xlu0 %v1475, 114
        %v1484 = vpop.permute.xlu0 %1483
        %1485 = vrot.lane.b32.xlu0 %v1476, 114
        %v1486 = vpop.permute.xlu0 %1485
        %1487 = vrot.lane.b32.xlu0 %v1477, 114
        %v1488 = vpop.permute.xlu0 %1487
        %1489 = vrot.lane.b32.xlu0 %v1478, 114
        %v1490 = vpop.permute.xlu0 %1489
        %1491 = vrot.lane.b32.xlu0 %v1479, 114
        %v1492 = vpop.permute.xlu0 %1491
        %1493 = vrot.lane.b32.xlu0 %v1480, 114
        %v1494 = vpop.permute.xlu0 %1493
        %1495 = vrot.lane.b32.xlu0 %v1481, 114
        %v1496 = vpop.permute.xlu0 %1495
        %1497 = vrot.lane.b32.xlu0 %v1482, 114
        %v1498 = vpop.permute.xlu0 %1497
        %1507 = vst.msk [vmem:[%s187 + $0xf] sm:$0x1] %vm867, %v1484
        %1508 = vst.msk [vmem:[%s187 + $0x1f] sm:$0x1] %vm867, %v1486
        %1509 = vst.msk [vmem:[%s187 + $0x2f] sm:$0x1] %vm867, %v1488
        %1510 = vst.msk [vmem:[%s187 + $0x3f] sm:$0x1] %vm867, %v1490
        %1511 = vst.msk [vmem:[%s187 + $0x4f] sm:$0x1] %vm867, %v1492
        %1512 = vst.msk [vmem:[%s187 + $0x5f] sm:$0x1] %vm867, %v1494
        %1513 = vst.msk [vmem:[%s187 + $0x6f] sm:$0x1] %vm867, %v1496
        %1514 = vst.msk [vmem:[%s187 + $0x7f] sm:$0x1] %vm867, %v1498
        %s1515 = sand.u32 %s109, 1
        %s1516 = scalar_lea.sflag [#allocation3], %s1515
        %s1517 = sand.u32 %s109, 1
        %s1518 = smul.addr %s1517, 128
        %s1519 = scalar_lea.vmem [#allocation2], %s1518
        // Predicated region
        $region33: #{conv_layer_forward.1} parent=31 // pred_check
          %p1520 = pneg %p119
        $region34: #{conv_layer_forward.1} parent=31 // pred_check_branch
          %1522 = sbr.rel (%p1520) target = $region36
        $region35: #{conv_layer_forward.1} parent=31 // pred_region
          %s1523 = smul.u32 2, %s22
          %1525 = vsyncadd %s1516, 0
          %s1526 = smul.addr %s21, 16
          %s1527 = sadd.s32 %s1523, %s1526
          %s1528 = smul.addr %s1527, 8
          %s1529 = scalar_lea.hbm %s3, %s1528
          %s1530 = sshll.u32 %s1519, 4
          %s1531 = int_to_ptr.vmem [resolvable:$true] %s1530
          %s1532 = sshll.u32 %s1529, 4
          %s1533 = int_to_ptr.hbm [resolvable:$true] %s1532
          %1538 = dma.vmem_to_hbm [thread:$0]  %s1531, 2048, %s1533, %s1516, 128, 128, 8
        $region36: #{conv_layer_forward.1} parent=31 // pred_fallthru
          _
      $region32: #{conv_layer_forward.1} parent=5 // pred_fallthru
        _
      %p1539 = scmp.le.s32.totalorder 2, %s12
      // Predicated region
      $region37: #{conv_layer_forward.1} parent=5 // pred_check
        %p1540 = pneg %p1539
      $region38: #{conv_layer_forward.1} parent=5 // pred_check_branch
        %1542 = sbr.rel (%p1540) target = $region40
      $region39: #{conv_layer_forward.1} parent=5 // pred_region
        %s1543 = ssub.s32 %s12, 2
        // Predicated region
        $region41: #{conv_layer_forward.1} parent=39 // pred_check
          %p1544 = pneg %p125
        $region42: #{conv_layer_forward.1} parent=39 // pred_check_branch
          %1546 = sbr.rel (%p1544) target = $region44
        $region43: #{conv_layer_forward.1} parent=39 // pred_region
          %s1547 = sand.u32 %s110, 1
          %s1548 = scalar_lea.sflag [#allocation3], %s1547
          %s1549 = sand.u32 %s110, 1
          %s1550 = smul.addr %s1549, 128
          %s1551 = scalar_lea.vmem [#allocation2], %s1550
          %1553 = dma.done %s1548, 2048
        $region44: #{conv_layer_forward.1} parent=39 // pred_fallthru
          _
      $region40: #{conv_layer_forward.1} parent=5 // pred_fallthru
        _
    $region6: #{conv_layer_forward.1} parent=1 // loop_footer
      %s16 = sadd.s32 1, %s12
    $region7: #{conv_layer_forward.1} parent=1 // loop_footer_branch
      %11 = sbr.rel target = $region3
    $region8: #{conv_layer_forward.1} parent=1 // loop_exit
      _
    %1554 = vsyncpa [#allocation3], 1
    %s1555 = scalar_lea.sflag [#allocation3], 1
    %1556 = vsyncpa %s1555, 1

</llo_original>
